<compile_context>
chip_gen: v5e
topology: v5e:2x2
jax: 0.10.0
libtpu: 0.0.40
codegen_flags: <defaults>
</compile_context>

<pallas_src>
import jax
import jax.numpy as jnp
import numpy as np
from jax import lax
from jax.experimental import pallas as pl
from jax.experimental.pallas import tpu as pltpu


def _downconv_resblock_kernel(xs_ref, w1_ref, s1_ref, t1_ref,
                              w2_ref, s2_ref, t2_ref, w3_ref, b3_ref,
                              o_ref, xpad_ref, h1pad_ref):
    # xs_ref: (B, 4, Hp, Wp, Cin) -- the 4 pool taps of B batch elements.
    B, _, Hp, Wp, Cin = xs_ref.shape
    Cout = o_ref.shape[-1]
    M = B * Hp * Wp

    # ---- 2x2 max-pool: elementwise max over the 4 pool taps ----
    xv = xs_ref[...]
    xpool = jnp.maximum(jnp.maximum(xv[:, 0], xv[:, 1]),
                        jnp.maximum(xv[:, 2], xv[:, 3]))      # (B, Hp, Wp, Cin)

    # Only the 1-pixel halo is zeroed each step (cheap); the interior is
    # fully overwritten below.
    def set_halo(pad_ref, h, w, c):
        zrow = jnp.zeros((B, 1, w + 2, c), jnp.float32)
        zcol = jnp.zeros((B, h + 2, 1, c), jnp.float32)
        pad_ref[:, 0:1, :, :] = zrow
        pad_ref[:, h + 1:h + 2, :, :] = zrow
        pad_ref[:, :, 0:1, :] = zcol
        pad_ref[:, :, w + 1:w + 2, :] = zcol

    set_halo(xpad_ref, Hp, Wp, Cin)
    xpad_ref[:, 1:Hp + 1, 1:Wp + 1, :] = xpool

    # ---- conv1 (3x3, pad=1) as a single im2col GEMM + folded BN1 + ReLU ----
    cols1 = [xpad_ref[:, dy:dy + Hp, dx:dx + Wp, :].reshape(M, Cin)
             for dy in range(3) for dx in range(3)]
    p1 = jnp.concatenate(cols1, axis=-1)                      # (M, 9*Cin) f32
    h1 = jnp.dot(p1.astype(jnp.bfloat16), w1_ref[...],
                 preferred_element_type=jnp.float32)          # (M, Cout) f32
    h1 = jnp.maximum(h1 * s1_ref[...] + t1_ref[...], 0.0)

    # ---- conv2 (3x3, pad=1) as a single im2col GEMM + folded BN2 + ReLU ----
    set_halo(h1pad_ref, Hp, Wp, Cout)
    h1pad_ref[:, 1:Hp + 1, 1:Wp + 1, :] = h1.reshape(B, Hp, Wp, Cout)
    cols2 = [h1pad_ref[:, dy:dy + Hp, dx:dx + Wp, :].reshape(M, Cout)
             for dy in range(3) for dx in range(3)]
    p2 = jnp.concatenate(cols2, axis=-1)                      # (M, 9*Cout) f32
    h2 = jnp.dot(p2.astype(jnp.bfloat16), w2_ref[...],
                 preferred_element_type=jnp.float32)
    h2 = jnp.maximum(h2 * s2_ref[...] + t2_ref[...], 0.0)

    # ---- 1x1 residual conv: reuses conv1's centre im2col tap (== pooled x) ----
    res = jnp.dot(cols1[4].astype(jnp.bfloat16), w3_ref[...],
                  preferred_element_type=jnp.float32) + b3_ref[...]

    out = jnp.maximum(res + h2, 0.0)                          # (M, Cout) f32
    o_ref[...] = out.reshape(B, Hp, Wp, Cout).astype(o_ref.dtype)


def downconv_block(x_nchw, params):
    N, Cin, H, W = x_nchw.shape
    Hp, Wp = H // 2, W // 2
    Cout = params['w1'].shape[0]
    eps = 1e-5

    # MaxPool2d(2) floor behavior: drop trailing row/col if H or W is odd.
    x = x_nchw[:, :, :2 * Hp, :2 * Wp].astype(jnp.float32)

    # Single restride pass (replaces transpose + 4-view stack of the old code):
    # NCHW -> (N, 4, Hp, Wp, Cin); the leading 4 are the 2x2 pool taps whose
    # in-kernel elementwise max equals MaxPool2d(2).
    xs = x.reshape(N, Cin, Hp, 2, Wp, 2)
    xs = jnp.transpose(xs, (0, 3, 5, 2, 4, 1)).reshape(N, 4, Hp, Wp, Cin)

    def fold_bn(conv_b, gamma, beta, mean, var):
        s = gamma / jnp.sqrt(var + eps)
        t = (conv_b - mean) * s + beta
        return (s.reshape(1, Cout).astype(jnp.float32),
                t.reshape(1, Cout).astype(jnp.float32))

    # torch conv weights (Cout, Cin, kh, kw) -> im2col layout (kh*kw*Cin, Cout).
    # bf16 MXU operands (accumulation stays f32 inside the kernel).
    w1 = jnp.transpose(params['w1'], (2, 3, 1, 0)).reshape(9 * Cin, Cout)
    w2 = jnp.transpose(params['w2'], (2, 3, 1, 0)).reshape(9 * Cout, Cout)
    w3 = jnp.transpose(params['w3'][:, :, 0, 0], (1, 0))              # (Cin, Cout)
    w1 = w1.astype(jnp.bfloat16)
    w2 = w2.astype(jnp.bfloat16)
    w3 = w3.astype(jnp.bfloat16)
    s1, t1 = fold_bn(params['b1'], params['g1'], params['be1'],
                     params['m1'], params['v1'])
    s2, t2 = fold_bn(params['b2'], params['g2'], params['be2'],
                     params['m2'], params['v2'])
    b3 = params['b3'].reshape(1, Cout).astype(jnp.float32)

    # Fold batch into the GEMM M dimension: largest batch tile with a
    # VMEM-friendly row count (<=1024), stopping once M >= 256 so the MXU row
    # dimension is filled on v6e/v7x while leaving a longer (splittable)
    # parallel grid axis for v7x's two TensorCores when N is large.
    HW = Hp * Wp
    b_tile = 1
    for b in range(1, N + 1):
        if N % b == 0 and b * HW <= 1024:
            b_tile = b
            if b * HW >= 256:
                break
    grid = (N // b_tile,)

    # NOTE: at production H/W on v7x (64 MiB VMEM) add a spatial (row) grid
    # axis with a 1-row halo instead of whole-image blocks.
    grid_spec = pltpu.PrefetchScalarGridSpec(
        num_scalar_prefetch=0,
        grid=grid,
        in_specs=[
            pl.BlockSpec((b_tile, 4, Hp, Wp, Cin), lambda b: (b, 0, 0, 0, 0)),
            pl.BlockSpec((9 * Cin, Cout), lambda b: (0, 0)),
            pl.BlockSpec((1, Cout), lambda b: (0, 0)),
            pl.BlockSpec((1, Cout), lambda b: (0, 0)),
            pl.BlockSpec((9 * Cout, Cout), lambda b: (0, 0)),
            pl.BlockSpec((1, Cout), lambda b: (0, 0)),
            pl.BlockSpec((1, Cout), lambda b: (0, 0)),
            pl.BlockSpec((Cin, Cout), lambda b: (0, 0)),
            pl.BlockSpec((1, Cout), lambda b: (0, 0)),
        ],
        out_specs=pl.BlockSpec((b_tile, Hp, Wp, Cout), lambda b: (b, 0, 0, 0)),
        scratch_shapes=[
            pltpu.VMEM((b_tile, Hp + 2, Wp + 2, Cin), jnp.float32),
            pltpu.VMEM((b_tile, Hp + 2, Wp + 2, Cout), jnp.float32),
        ],
    )
    out_nhwc = pl.pallas_call(
        _downconv_resblock_kernel,
        out_shape=jax.ShapeDtypeStruct((N, Hp, Wp, Cout), jnp.float32),
        grid_spec=grid_spec,
        compiler_params=pltpu.CompilerParams(
            dimension_semantics=("parallel",),
            vmem_limit_bytes=32 * 1024 * 1024),
    )(xs, w1, s1, t1, w2, s2, t2, w3, b3)
    return jnp.transpose(out_nhwc, (0, 3, 1, 2))                      # NCHW


def init_params(key, Cin, Cout):
    ks = jax.random.split(key, 10)
    p = {}
    p['w1'] = 0.1 * jax.random.normal(ks[0], (Cout, Cin, 3, 3), jnp.float32)
    p['b1'] = 0.1 * jax.random.normal(ks[1], (Cout,), jnp.float32)
    p['w2'] = 0.1 * jax.random.normal(ks[2], (Cout, Cout, 3, 3), jnp.float32)
    p['b2'] = 0.1 * jax.random.normal(ks[3], (Cout,), jnp.float32)
    p['w3'] = 0.1 * jax.random.normal(ks[4], (Cout, Cin, 1, 1), jnp.float32)
    p['b3'] = 0.1 * jax.random.normal(ks[5], (Cout,), jnp.float32)
    # BatchNorm (inference mode): affine params + running stats
    p['g1'] = 1.0 + 0.1 * jax.random.normal(ks[6], (Cout,), jnp.float32)
    p['be1'] = 0.05 * jnp.arange(Cout, dtype=jnp.float32)
    p['m1'] = 0.02 * jnp.arange(Cout, dtype=jnp.float32)
    p['v1'] = 1.0 + 0.1 * jnp.abs(jax.random.normal(ks[7], (Cout,), jnp.float32))
    p['g2'] = 1.0 + 0.1 * jax.random.normal(ks[8], (Cout,), jnp.float32)
    p['be2'] = -0.03 * jnp.arange(Cout, dtype=jnp.float32)
    p['m2'] = 0.01 * jnp.arange(Cout, dtype=jnp.float32)
    p['v2'] = 1.0 + 0.1 * jnp.abs(jax.random.normal(ks[9], (Cout,), jnp.float32))
    return p


def reference(x_nchw, params):
    eps = 1e-5
    xp = lax.reduce_window(x_nchw, -jnp.inf, lax.max,
                           (1, 1, 2, 2), (1, 1, 2, 2), 'VALID')

    def conv(x, w, b, pad):
        y = lax.conv_general_dilated(x, w, (1, 1), [(pad, pad), (pad, pad)],
                                     dimension_numbers=('NCHW', 'OIHW', 'NCHW'))
        return y + b.reshape(1, -1, 1, 1)

    def bn(x, g, be, m, v):
        return ((x - m.reshape(1, -1, 1, 1))
                / jnp.sqrt(v.reshape(1, -1, 1, 1) + eps)
                * g.reshape(1, -1, 1, 1) + be.reshape(1, -1, 1, 1))

    h = jnp.maximum(bn(conv(xp, params['w1'], params['b1'], 1),
                       params['g1'], params['be1'], params['m1'], params['v1']), 0.0)
    h = jnp.maximum(bn(conv(h, params['w2'], params['b2'], 1),
                       params['g2'], params['be2'], params['m2'], params['v2']), 0.0)
    res = conv(xp, params['w3'], params['b3'], 0)
    return jnp.maximum(res + h, 0.0)


if __name__ == "__main__":
    key = jax.random.PRNGKey(0)
    kx, kp = jax.random.split(key)
    N, Cin, Cout, H, W = 2, 4, 8, 16, 16
    x = jax.random.normal(kx, (N, Cin, H, W), jnp.float32)   # NCHW like PyTorch
    params = init_params(kp, Cin, Cout)

    out = jax.block_until_ready(downconv_block(x, params))
    ref = jax.block_until_ready(reference(x, params))

    assert out.shape == (N, Cout, H // 2, W // 2), out.shape
    # bf16 MXU operands (f32 accumulation) -> slightly looser tolerance than pure f32.
    err = float(np.max(np.abs(np.asarray(out) - np.asarray(ref))))
    assert np.allclose(np.asarray(out), np.asarray(ref), atol=5e-2, rtol=5e-2), err
    print("KERNEL_OK")
</pallas_src>

<mosaic_0001>
module attributes {stable_mosaic.version = 11 : i64} {
  func.func @_downconv_resblock_kernel(%arg0: i32, %arg1: memref<2x4x8x8x4xf32, #tpu.memory_space<vmem>>, %arg2: memref<36x8xbf16, #tpu.memory_space<vmem>>, %arg3: memref<1x8xf32, #tpu.memory_space<vmem>>, %arg4: memref<1x8xf32, #tpu.memory_space<vmem>>, %arg5: memref<72x8xbf16, #tpu.memory_space<vmem>>, %arg6: memref<1x8xf32, #tpu.memory_space<vmem>>, %arg7: memref<1x8xf32, #tpu.memory_space<vmem>>, %arg8: memref<4x8xbf16, #tpu.memory_space<vmem>>, %arg9: memref<1x8xf32, #tpu.memory_space<vmem>>, %arg10: memref<2x8x8x8xf32, #tpu.memory_space<vmem>>, %arg11: memref<2x10x10x4xf32, #tpu.memory_space<vmem>>, %arg12: memref<2x10x10x8xf32, #tpu.memory_space<vmem>>) attributes {dimension_semantics = [#tpu.dimension_semantics<parallel>], iteration_bounds = array<i64: 1>, scalar_prefetch = 0 : i64, scratch_operands = 2 : i64, tpu.core_type = #tpu.core_type<tc>, window_params = [{transform_indices = @transform_0, window_bounds = array<i64: 2, 4, 8, 8, 4>}, {pipeline_mode = #tpu.pipeline_mode<synchronous>, transform_indices = @transform_1, window_bounds = array<i64: 36, 8>}, {pipeline_mode = #tpu.pipeline_mode<synchronous>, transform_indices = @transform_2, window_bounds = array<i64: 1, 8>}, {pipeline_mode = #tpu.pipeline_mode<synchronous>, transform_indices = @transform_3, window_bounds = array<i64: 1, 8>}, {pipeline_mode = #tpu.pipeline_mode<synchronous>, transform_indices = @transform_4, window_bounds = array<i64: 72, 8>}, {pipeline_mode = #tpu.pipeline_mode<synchronous>, transform_indices = @transform_5, window_bounds = array<i64: 1, 8>}, {pipeline_mode = #tpu.pipeline_mode<synchronous>, transform_indices = @transform_6, window_bounds = array<i64: 1, 8>}, {pipeline_mode = #tpu.pipeline_mode<synchronous>, transform_indices = @transform_7, window_bounds = array<i64: 4, 8>}, {pipeline_mode = #tpu.pipeline_mode<synchronous>, transform_indices = @transform_8, window_bounds = array<i64: 1, 8>}, {transform_indices = @transform_9, window_bounds = array<i64: 2, 8, 8, 8>}]} {
    %c0 = arith.constant 0 : index
    %c0_0 = arith.constant 0 : index
    %c0_1 = arith.constant 0 : index
    %c0_2 = arith.constant 0 : index
    %c0_3 = arith.constant 0 : index
    %0 = vector.load %arg1[%c0, %c0_0, %c0_1, %c0_2, %c0_3] : memref<2x4x8x8x4xf32, #tpu.memory_space<vmem>>, vector<2x4x8x8x4xf32>
    %1 = vector.extract_strided_slice %0 {offsets = [0, 0, 0, 0, 0], sizes = [2, 1, 8, 8, 4], strides = [1, 1, 1, 1, 1]} : vector<2x4x8x8x4xf32> to vector<2x1x8x8x4xf32>
    %2 = vector.shape_cast %1 : vector<2x1x8x8x4xf32> to vector<2x8x8x4xf32>
    %3 = vector.extract_strided_slice %0 {offsets = [0, 1, 0, 0, 0], sizes = [2, 1, 8, 8, 4], strides = [1, 1, 1, 1, 1]} : vector<2x4x8x8x4xf32> to vector<2x1x8x8x4xf32>
    %4 = vector.shape_cast %3 : vector<2x1x8x8x4xf32> to vector<2x8x8x4xf32>
    %5 = arith.maximumf %2, %4 : vector<2x8x8x4xf32>
    %6 = vector.extract_strided_slice %0 {offsets = [0, 2, 0, 0, 0], sizes = [2, 1, 8, 8, 4], strides = [1, 1, 1, 1, 1]} : vector<2x4x8x8x4xf32> to vector<2x1x8x8x4xf32>
    %7 = vector.shape_cast %6 : vector<2x1x8x8x4xf32> to vector<2x8x8x4xf32>
    %8 = vector.extract_strided_slice %0 {offsets = [0, 3, 0, 0, 0], sizes = [2, 1, 8, 8, 4], strides = [1, 1, 1, 1, 1]} : vector<2x4x8x8x4xf32> to vector<2x1x8x8x4xf32>
    %9 = vector.shape_cast %8 : vector<2x1x8x8x4xf32> to vector<2x8x8x4xf32>
    %10 = arith.maximumf %7, %9 : vector<2x8x8x4xf32>
    %11 = arith.maximumf %5, %10 : vector<2x8x8x4xf32>
    %cst = arith.constant 0.000000e+00 : f32
    %12 = vector.broadcast %cst : f32 to vector<2x1x10x4xf32>
    %cst_4 = arith.constant 0.000000e+00 : f32
    %13 = vector.broadcast %cst_4 : f32 to vector<2x10x1x4xf32>
    %c0_5 = arith.constant 0 : index
    %c0_6 = arith.constant 0 : index
    %c0_7 = arith.constant 0 : index
    %c0_8 = arith.constant 0 : index
    %14 = vector.load %arg11[%c0_5, %c0_6, %c0_7, %c0_8] : memref<2x10x10x4xf32, #tpu.memory_space<vmem>>, vector<2x1x10x4xf32>
    tpu.vector_store %arg11[%c0_5, %c0_6, %c0_7, %c0_8], %12 {strides = array<i32>} : memref<2x10x10x4xf32, #tpu.memory_space<vmem>>, vector<2x1x10x4xf32>,
    %c0_9 = arith.constant 0 : index
    %c9 = arith.constant 9 : index
    %c0_10 = arith.constant 0 : index
    %c0_11 = arith.constant 0 : index
    %15 = vector.load %arg11[%c0_9, %c9, %c0_10, %c0_11] : memref<2x10x10x4xf32, #tpu.memory_space<vmem>>, vector<2x1x10x4xf32>
    tpu.vector_store %arg11[%c0_9, %c9, %c0_10, %c0_11], %12 {strides = array<i32>} : memref<2x10x10x4xf32, #tpu.memory_space<vmem>>, vector<2x1x10x4xf32>,
    %c0_12 = arith.constant 0 : index
    %c0_13 = arith.constant 0 : index
    %c0_14 = arith.constant 0 : index
    %c0_15 = arith.constant 0 : index
    %16 = vector.load %arg11[%c0_12, %c0_13, %c0_14, %c0_15] : memref<2x10x10x4xf32, #tpu.memory_space<vmem>>, vector<2x10x1x4xf32>
    tpu.vector_store %arg11[%c0_12, %c0_13, %c0_14, %c0_15], %13 {strides = array<i32>} : memref<2x10x10x4xf32, #tpu.memory_space<vmem>>, vector<2x10x1x4xf32>,
    %c0_16 = arith.constant 0 : index
    %c0_17 = arith.constant 0 : index
    %c9_18 = arith.constant 9 : index
    %c0_19 = arith.constant 0 : index
    %17 = vector.load %arg11[%c0_16, %c0_17, %c9_18, %c0_19] : memref<2x10x10x4xf32, #tpu.memory_space<vmem>>, vector<2x10x1x4xf32>
    tpu.vector_store %arg11[%c0_16, %c0_17, %c9_18, %c0_19], %13 {strides = array<i32>} : memref<2x10x10x4xf32, #tpu.memory_space<vmem>>, vector<2x10x1x4xf32>,
    %c0_20 = arith.constant 0 : index
    %c1 = arith.constant 1 : index
    %c1_21 = arith.constant 1 : index
    %c0_22 = arith.constant 0 : index
    %18 = vector.load %arg11[%c0_20, %c1, %c1_21, %c0_22] : memref<2x10x10x4xf32, #tpu.memory_space<vmem>>, vector<2x8x8x4xf32>
    tpu.vector_store %arg11[%c0_20, %c1, %c1_21, %c0_22], %11 {strides = array<i32>} : memref<2x10x10x4xf32, #tpu.memory_space<vmem>>, vector<2x8x8x4xf32>,
    %c0_23 = arith.constant 0 : index
    %c0_24 = arith.constant 0 : index
    %c0_25 = arith.constant 0 : index
    %c0_26 = arith.constant 0 : index
    %19 = vector.load %arg11[%c0_23, %c0_24, %c0_25, %c0_26] : memref<2x10x10x4xf32, #tpu.memory_space<vmem>>, vector<2x8x8x4xf32>
    %20 = vector.shape_cast %19 : vector<2x8x8x4xf32> to vector<128x4xf32>
    %c0_27 = arith.constant 0 : index
    %c0_28 = arith.constant 0 : index
    %c1_29 = arith.constant 1 : index
    %c0_30 = arith.constant 0 : index
    %21 = vector.load %arg11[%c0_27, %c0_28, %c1_29, %c0_30] : memref<2x10x10x4xf32, #tpu.memory_space<vmem>>, vector<2x8x8x4xf32>
    %22 = vector.shape_cast %21 : vector<2x8x8x4xf32> to vector<128x4xf32>
    %c0_31 = arith.constant 0 : index
    %c0_32 = arith.constant 0 : index
    %c2 = arith.constant 2 : index
    %c0_33 = arith.constant 0 : index
    %23 = vector.load %arg11[%c0_31, %c0_32, %c2, %c0_33] : memref<2x10x10x4xf32, #tpu.memory_space<vmem>>, vector<2x8x8x4xf32>
    %24 = vector.shape_cast %23 : vector<2x8x8x4xf32> to vector<128x4xf32>
    %c0_34 = arith.constant 0 : index
    %c1_35 = arith.constant 1 : index
    %c0_36 = arith.constant 0 : index
    %c0_37 = arith.constant 0 : index
    %25 = vector.load %arg11[%c0_34, %c1_35, %c0_36, %c0_37] : memref<2x10x10x4xf32, #tpu.memory_space<vmem>>, vector<2x8x8x4xf32>
    %26 = vector.shape_cast %25 : vector<2x8x8x4xf32> to vector<128x4xf32>
    %c0_38 = arith.constant 0 : index
    %c1_39 = arith.constant 1 : index
    %c1_40 = arith.constant 1 : index
    %c0_41 = arith.constant 0 : index
    %27 = vector.load %arg11[%c0_38, %c1_39, %c1_40, %c0_41] : memref<2x10x10x4xf32, #tpu.memory_space<vmem>>, vector<2x8x8x4xf32>
    %28 = vector.shape_cast %27 : vector<2x8x8x4xf32> to vector<128x4xf32>
    %c0_42 = arith.constant 0 : index
    %c1_43 = arith.constant 1 : index
    %c2_44 = arith.constant 2 : index
    %c0_45 = arith.constant 0 : index
    %29 = vector.load %arg11[%c0_42, %c1_43, %c2_44, %c0_45] : memref<2x10x10x4xf32, #tpu.memory_space<vmem>>, vector<2x8x8x4xf32>
    %30 = vector.shape_cast %29 : vector<2x8x8x4xf32> to vector<128x4xf32>
    %c0_46 = arith.constant 0 : index
    %c2_47 = arith.constant 2 : index
    %c0_48 = arith.constant 0 : index
    %c0_49 = arith.constant 0 : index
    %31 = vector.load %arg11[%c0_46, %c2_47, %c0_48, %c0_49] : memref<2x10x10x4xf32, #tpu.memory_space<vmem>>, vector<2x8x8x4xf32>
    %32 = vector.shape_cast %31 : vector<2x8x8x4xf32> to vector<128x4xf32>
    %c0_50 = arith.constant 0 : index
    %c2_51 = arith.constant 2 : index
    %c1_52 = arith.constant 1 : index
    %c0_53 = arith.constant 0 : index
    %33 = vector.load %arg11[%c0_50, %c2_51, %c1_52, %c0_53] : memref<2x10x10x4xf32, #tpu.memory_space<vmem>>, vector<2x8x8x4xf32>
    %34 = vector.shape_cast %33 : vector<2x8x8x4xf32> to vector<128x4xf32>
    %c0_54 = arith.constant 0 : index
    %c2_55 = arith.constant 2 : index
    %c2_56 = arith.constant 2 : index
    %c0_57 = arith.constant 0 : index
    %35 = vector.load %arg11[%c0_54, %c2_55, %c2_56, %c0_57] : memref<2x10x10x4xf32, #tpu.memory_space<vmem>>, vector<2x8x8x4xf32>
    %36 = vector.shape_cast %35 : vector<2x8x8x4xf32> to vector<128x4xf32>
    %37 = tpu.concatenate %20, %22, %24, %26, %28, %30, %32, %34, %36 in 1 : vector<128x4xf32>, vector<128x4xf32>, vector<128x4xf32>, vector<128x4xf32>, vector<128x4xf32>, vector<128x4xf32>, vector<128x4xf32>, vector<128x4xf32>, vector<128x4xf32> -> vector<128x36xf32>
    %38 = arith.truncf %37 : vector<128x36xf32> to vector<128x36xbf16>
    %c0_58 = arith.constant 0 : index
    %c0_59 = arith.constant 0 : index
    %39 = vector.load %arg2[%c0_58, %c0_59] : memref<36x8xbf16, #tpu.memory_space<vmem>>, vector<36x8xbf16>
    %cst_60 = arith.constant dense<0.000000e+00> : vector<128x8xf32>
    %40 = tpu.matmul %38, %39, %cst_60 {dimension_numbers = #tpu.dot_dimension_numbers<[1], [0], [0], [1], [0, 0, 1, 1], [], []>} : vector<128x36xbf16>, vector<36x8xbf16>, vector<128x8xf32> -> vector<128x8xf32>
    %c0_61 = arith.constant 0 : index
    %c0_62 = arith.constant 0 : index
    %41 = vector.load %arg3[%c0_61, %c0_62] : memref<1x8xf32, #tpu.memory_space<vmem>>, vector<1x8xf32>
    %42 = vector.broadcast %41 : vector<1x8xf32> to vector<128x8xf32>
    %43 = arith.mulf %40, %42 : vector<128x8xf32>
    %c0_63 = arith.constant 0 : index
    %c0_64 = arith.constant 0 : index
    %44 = vector.load %arg4[%c0_63, %c0_64] : memref<1x8xf32, #tpu.memory_space<vmem>>, vector<1x8xf32>
    %45 = vector.broadcast %44 : vector<1x8xf32> to vector<128x8xf32>
    %46 = arith.addf %43, %45 : vector<128x8xf32>
    %cst_65 = arith.constant 0.000000e+00 : f32
    %47 = vector.broadcast %cst_65 : f32 to vector<128x8xf32>
    %48 = arith.maximumf %46, %47 : vector<128x8xf32>
    %cst_66 = arith.constant 0.000000e+00 : f32
    %49 = vector.broadcast %cst_66 : f32 to vector<2x1x10x8xf32>
    %cst_67 = arith.constant 0.000000e+00 : f32
    %50 = vector.broadcast %cst_67 : f32 to vector<2x10x1x8xf32>
    %c0_68 = arith.constant 0 : index
    %c0_69 = arith.constant 0 : index
    %c0_70 = arith.constant 0 : index
    %c0_71 = arith.constant 0 : index
    %51 = vector.load %arg12[%c0_68, %c0_69, %c0_70, %c0_71] : memref<2x10x10x8xf32, #tpu.memory_space<vmem>>, vector<2x1x10x8xf32>
    tpu.vector_store %arg12[%c0_68, %c0_69, %c0_70, %c0_71], %49 {strides = array<i32>} : memref<2x10x10x8xf32, #tpu.memory_space<vmem>>, vector<2x1x10x8xf32>,
    %c0_72 = arith.constant 0 : index
    %c9_73 = arith.constant 9 : index
    %c0_74 = arith.constant 0 : index
    %c0_75 = arith.constant 0 : index
    %52 = vector.load %arg12[%c0_72, %c9_73, %c0_74, %c0_75] : memref<2x10x10x8xf32, #tpu.memory_space<vmem>>, vector<2x1x10x8xf32>
    tpu.vector_store %arg12[%c0_72, %c9_73, %c0_74, %c0_75], %49 {strides = array<i32>} : memref<2x10x10x8xf32, #tpu.memory_space<vmem>>, vector<2x1x10x8xf32>,
    %c0_76 = arith.constant 0 : index
    %c0_77 = arith.constant 0 : index
    %c0_78 = arith.constant 0 : index
    %c0_79 = arith.constant 0 : index
    %53 = vector.load %arg12[%c0_76, %c0_77, %c0_78, %c0_79] : memref<2x10x10x8xf32, #tpu.memory_space<vmem>>, vector<2x10x1x8xf32>
    tpu.vector_store %arg12[%c0_76, %c0_77, %c0_78, %c0_79], %50 {strides = array<i32>} : memref<2x10x10x8xf32, #tpu.memory_space<vmem>>, vector<2x10x1x8xf32>,
    %c0_80 = arith.constant 0 : index
    %c0_81 = arith.constant 0 : index
    %c9_82 = arith.constant 9 : index
    %c0_83 = arith.constant 0 : index
    %54 = vector.load %arg12[%c0_80, %c0_81, %c9_82, %c0_83] : memref<2x10x10x8xf32, #tpu.memory_space<vmem>>, vector<2x10x1x8xf32>
    tpu.vector_store %arg12[%c0_80, %c0_81, %c9_82, %c0_83], %50 {strides = array<i32>} : memref<2x10x10x8xf32, #tpu.memory_space<vmem>>, vector<2x10x1x8xf32>,
    %55 = vector.shape_cast %48 : vector<128x8xf32> to vector<2x8x8x8xf32>
    %c0_84 = arith.constant 0 : index
    %c1_85 = arith.constant 1 : index
    %c1_86 = arith.constant 1 : index
    %c0_87 = arith.constant 0 : index
    %56 = vector.load %arg12[%c0_84, %c1_85, %c1_86, %c0_87] : memref<2x10x10x8xf32, #tpu.memory_space<vmem>>, vector<2x8x8x8xf32>
    tpu.vector_store %arg12[%c0_84, %c1_85, %c1_86, %c0_87], %55 {strides = array<i32>} : memref<2x10x10x8xf32, #tpu.memory_space<vmem>>, vector<2x8x8x8xf32>,
    %c0_88 = arith.constant 0 : index
    %c0_89 = arith.constant 0 : index
    %c0_90 = arith.constant 0 : index
    %c0_91 = arith.constant 0 : index
    %57 = vector.load %arg12[%c0_88, %c0_89, %c0_90, %c0_91] : memref<2x10x10x8xf32, #tpu.memory_space<vmem>>, vector<2x8x8x8xf32>
    %58 = vector.shape_cast %57 : vector<2x8x8x8xf32> to vector<128x8xf32>
    %c0_92 = arith.constant 0 : index
    %c0_93 = arith.constant 0 : index
    %c1_94 = arith.constant 1 : index
    %c0_95 = arith.constant 0 : index
    %59 = vector.load %arg12[%c0_92, %c0_93, %c1_94, %c0_95] : memref<2x10x10x8xf32, #tpu.memory_space<vmem>>, vector<2x8x8x8xf32>
    %60 = vector.shape_cast %59 : vector<2x8x8x8xf32> to vector<128x8xf32>
    %c0_96 = arith.constant 0 : index
    %c0_97 = arith.constant 0 : index
    %c2_98 = arith.constant 2 : index
    %c0_99 = arith.constant 0 : index
    %61 = vector.load %arg12[%c0_96, %c0_97, %c2_98, %c0_99] : memref<2x10x10x8xf32, #tpu.memory_space<vmem>>, vector<2x8x8x8xf32>
    %62 = vector.shape_cast %61 : vector<2x8x8x8xf32> to vector<128x8xf32>
    %c0_100 = arith.constant 0 : index
    %c1_101 = arith.constant 1 : index
    %c0_102 = arith.constant 0 : index
    %c0_103 = arith.constant 0 : index
    %63 = vector.load %arg12[%c0_100, %c1_101, %c0_102, %c0_103] : memref<2x10x10x8xf32, #tpu.memory_space<vmem>>, vector<2x8x8x8xf32>
    %64 = vector.shape_cast %63 : vector<2x8x8x8xf32> to vector<128x8xf32>
    %c0_104 = arith.constant 0 : index
    %c1_105 = arith.constant 1 : index
    %c1_106 = arith.constant 1 : index
    %c0_107 = arith.constant 0 : index
    %65 = vector.load %arg12[%c0_104, %c1_105, %c1_106, %c0_107] : memref<2x10x10x8xf32, #tpu.memory_space<vmem>>, vector<2x8x8x8xf32>
    %66 = vector.shape_cast %65 : vector<2x8x8x8xf32> to vector<128x8xf32>
    %c0_108 = arith.constant 0 : index
    %c1_109 = arith.constant 1 : index
    %c2_110 = arith.constant 2 : index
    %c0_111 = arith.constant 0 : index
    %67 = vector.load %arg12[%c0_108, %c1_109, %c2_110, %c0_111] : memref<2x10x10x8xf32, #tpu.memory_space<vmem>>, vector<2x8x8x8xf32>
    %68 = vector.shape_cast %67 : vector<2x8x8x8xf32> to vector<128x8xf32>
    %c0_112 = arith.constant 0 : index
    %c2_113 = arith.constant 2 : index
    %c0_114 = arith.constant 0 : index
    %c0_115 = arith.constant 0 : index
    %69 = vector.load %arg12[%c0_112, %c2_113, %c0_114, %c0_115] : memref<2x10x10x8xf32, #tpu.memory_space<vmem>>, vector<2x8x8x8xf32>
    %70 = vector.shape_cast %69 : vector<2x8x8x8xf32> to vector<128x8xf32>
    %c0_116 = arith.constant 0 : index
    %c2_117 = arith.constant 2 : index
    %c1_118 = arith.constant 1 : index
    %c0_119 = arith.constant 0 : index
    %71 = vector.load %arg12[%c0_116, %c2_117, %c1_118, %c0_119] : memref<2x10x10x8xf32, #tpu.memory_space<vmem>>, vector<2x8x8x8xf32>
    %72 = vector.shape_cast %71 : vector<2x8x8x8xf32> to vector<128x8xf32>
    %c0_120 = arith.constant 0 : index
    %c2_121 = arith.constant 2 : index
    %c2_122 = arith.constant 2 : index
    %c0_123 = arith.constant 0 : index
    %73 = vector.load %arg12[%c0_120, %c2_121, %c2_122, %c0_123] : memref<2x10x10x8xf32, #tpu.memory_space<vmem>>, vector<2x8x8x8xf32>
    %74 = vector.shape_cast %73 : vector<2x8x8x8xf32> to vector<128x8xf32>
    %75 = tpu.concatenate %58, %60, %62, %64, %66, %68, %70, %72, %74 in 1 : vector<128x8xf32>, vector<128x8xf32>, vector<128x8xf32>, vector<128x8xf32>, vector<128x8xf32>, vector<128x8xf32>, vector<128x8xf32>, vector<128x8xf32>, vector<128x8xf32> -> vector<128x72xf32>
    %76 = arith.truncf %75 : vector<128x72xf32> to vector<128x72xbf16>
    %c0_124 = arith.constant 0 : index
    %c0_125 = arith.constant 0 : index
    %77 = vector.load %arg5[%c0_124, %c0_125] : memref<72x8xbf16, #tpu.memory_space<vmem>>, vector<72x8xbf16>
    %cst_126 = arith.constant dense<0.000000e+00> : vector<128x8xf32>
    %78 = tpu.matmul %76, %77, %cst_126 {dimension_numbers = #tpu.dot_dimension_numbers<[1], [0], [0], [1], [0, 0, 1, 1], [], []>} : vector<128x72xbf16>, vector<72x8xbf16>, vector<128x8xf32> -> vector<128x8xf32>
    %c0_127 = arith.constant 0 : index
    %c0_128 = arith.constant 0 : index
    %79 = vector.load %arg6[%c0_127, %c0_128] : memref<1x8xf32, #tpu.memory_space<vmem>>, vector<1x8xf32>
    %80 = vector.broadcast %79 : vector<1x8xf32> to vector<128x8xf32>
    %81 = arith.mulf %78, %80 : vector<128x8xf32>
    %c0_129 = arith.constant 0 : index
    %c0_130 = arith.constant 0 : index
    %82 = vector.load %arg7[%c0_129, %c0_130] : memref<1x8xf32, #tpu.memory_space<vmem>>, vector<1x8xf32>
    %83 = vector.broadcast %82 : vector<1x8xf32> to vector<128x8xf32>
    %84 = arith.addf %81, %83 : vector<128x8xf32>
    %cst_131 = arith.constant 0.000000e+00 : f32
    %85 = vector.broadcast %cst_131 : f32 to vector<128x8xf32>
    %86 = arith.maximumf %84, %85 : vector<128x8xf32>
    %87 = arith.truncf %28 : vector<128x4xf32> to vector<128x4xbf16>
    %c0_132 = arith.constant 0 : index
    %c0_133 = arith.constant 0 : index
    %88 = vector.load %arg8[%c0_132, %c0_133] : memref<4x8xbf16, #tpu.memory_space<vmem>>, vector<4x8xbf16>
    %cst_134 = arith.constant dense<0.000000e+00> : vector<128x8xf32>
    %89 = tpu.matmul %87, %88, %cst_134 {dimension_numbers = #tpu.dot_dimension_numbers<[1], [0], [0], [1], [0, 0, 1, 1], [], []>} : vector<128x4xbf16>, vector<4x8xbf16>, vector<128x8xf32> -> vector<128x8xf32>
    %c0_135 = arith.constant 0 : index
    %c0_136 = arith.constant 0 : index
    %90 = vector.load %arg9[%c0_135, %c0_136] : memref<1x8xf32, #tpu.memory_space<vmem>>, vector<1x8xf32>
    %91 = vector.broadcast %90 : vector<1x8xf32> to vector<128x8xf32>
    %92 = arith.addf %89, %91 : vector<128x8xf32>
    %93 = arith.addf %92, %86 : vector<128x8xf32>
    %cst_137 = arith.constant 0.000000e+00 : f32
    %94 = vector.broadcast %cst_137 : f32 to vector<128x8xf32>
    %95 = arith.maximumf %93, %94 : vector<128x8xf32>
    %96 = vector.shape_cast %95 : vector<128x8xf32> to vector<2x8x8x8xf32>
    %c0_138 = arith.constant 0 : index
    %c0_139 = arith.constant 0 : index
    %c0_140 = arith.constant 0 : index
    %c0_141 = arith.constant 0 : index
    %97 = vector.load %arg10[%c0_138, %c0_139, %c0_140, %c0_141] : memref<2x8x8x8xf32, #tpu.memory_space<vmem>>, vector<2x8x8x8xf32>
    tpu.vector_store %arg10[%c0_138, %c0_139, %c0_140, %c0_141], %96 {strides = array<i32>} : memref<2x8x8x8xf32, #tpu.memory_space<vmem>>, vector<2x8x8x8xf32>,
    return
  }
  func.func @transform_0(%arg0: i32) -> (i32, i32, i32, i32, i32) {
    %c0_i32 = arith.constant 0 : i32
    %c0_i32_0 = arith.constant 0 : i32
    %c0_i32_1 = arith.constant 0 : i32
    %c0_i32_2 = arith.constant 0 : i32
    %c0_i32_3 = arith.constant 0 : i32
    return %arg0, %c0_i32, %c0_i32_0, %c0_i32_1, %c0_i32_2 : i32, i32, i32, i32, i32
  }
  func.func @transform_1(%arg0: i32) -> (i32, i32) {
    %c0_i32 = arith.constant 0 : i32
    %c0_i32_0 = arith.constant 0 : i32
    %c0_i32_1 = arith.constant 0 : i32
    return %c0_i32, %c0_i32_0 : i32, i32
  }
  func.func @transform_2(%arg0: i32) -> (i32, i32) {
    %c0_i32 = arith.constant 0 : i32
    %c0_i32_0 = arith.constant 0 : i32
    %c0_i32_1 = arith.constant 0 : i32
    return %c0_i32, %c0_i32_0 : i32, i32
  }
  func.func @transform_3(%arg0: i32) -> (i32, i32) {
    %c0_i32 = arith.constant 0 : i32
    %c0_i32_0 = arith.constant 0 : i32
    %c0_i32_1 = arith.constant 0 : i32
    return %c0_i32, %c0_i32_0 : i32, i32
  }
  func.func @transform_4(%arg0: i32) -> (i32, i32) {
    %c0_i32 = arith.constant 0 : i32
    %c0_i32_0 = arith.constant 0 : i32
    %c0_i32_1 = arith.constant 0 : i32
    return %c0_i32, %c0_i32_0 : i32, i32
  }
  func.func @transform_5(%arg0: i32) -> (i32, i32) {
    %c0_i32 = arith.constant 0 : i32
    %c0_i32_0 = arith.constant 0 : i32
    %c0_i32_1 = arith.constant 0 : i32
    return %c0_i32, %c0_i32_0 : i32, i32
  }
  func.func @transform_6(%arg0: i32) -> (i32, i32) {
    %c0_i32 = arith.constant 0 : i32
    %c0_i32_0 = arith.constant 0 : i32
    %c0_i32_1 = arith.constant 0 : i32
    return %c0_i32, %c0_i32_0 : i32, i32
  }
  func.func @transform_7(%arg0: i32) -> (i32, i32) {
    %c0_i32 = arith.constant 0 : i32
    %c0_i32_0 = arith.constant 0 : i32
    %c0_i32_1 = arith.constant 0 : i32
    return %c0_i32, %c0_i32_0 : i32, i32
  }
  func.func @transform_8(%arg0: i32) -> (i32, i32) {
    %c0_i32 = arith.constant 0 : i32
    %c0_i32_0 = arith.constant 0 : i32
    %c0_i32_1 = arith.constant 0 : i32
    return %c0_i32, %c0_i32_0 : i32, i32
  }
  func.func @transform_9(%arg0: i32) -> (i32, i32, i32, i32) {
    %c0_i32 = arith.constant 0 : i32
    %c0_i32_0 = arith.constant 0 : i32
    %c0_i32_1 = arith.constant 0 : i32
    %c0_i32_2 = arith.constant 0 : i32
    return %arg0, %c0_i32, %c0_i32_0, %c0_i32_1 : i32, i32, i32, i32
  }
}

</mosaic_0001>

<llo_original>
// kernel: tpu_custom_call.1
$region0: #{tpu_custom_call.1}
  #allocation0 [shape = 'u32[]', space=smem, size = 0x4, offset = 0x4, fixed_abs, tag = 'smem constant byte address 0x4 - core index']
  #allocation1 [shape = 'u32[72,128]{1,0:T(1,128)}', space=vmem, size = 0x9000, scoped, tag = 'internal scratch']
  #allocation2 [shape = 'f32[2,10,10,4]{3,2,1,0:T(8,128)}', space=vmem, size = 0x28000, scoped, tag = 'scratch operand']
  #allocation3 [shape = 'f32[2,10,10,8]{3,2,1,0:T(8,128)}', space=vmem, size = 0x28000, scoped, tag = 'scratch operand']
  %s0 = inlined_call_operand.vmem [shape: f32[2,4,8,8,4], index: 0, kind: input, shape index: {}]
  %s1 = inlined_call_operand.vmem [shape: bf16[36,8], index: 1, kind: input, shape index: {}]
  %s2 = inlined_call_operand.vmem [shape: f32[1,8], index: 2, kind: input, shape index: {}]
  %s3 = inlined_call_operand.vmem [shape: f32[1,8], index: 3, kind: input, shape index: {}]
  %s4 = inlined_call_operand.vmem [shape: bf16[72,8], index: 4, kind: input, shape index: {}]
  %s5 = inlined_call_operand.vmem [shape: f32[1,8], index: 5, kind: input, shape index: {}]
  %s6 = inlined_call_operand.vmem [shape: f32[1,8], index: 6, kind: input, shape index: {}]
  %s7 = inlined_call_operand.vmem [shape: bf16[4,8], index: 7, kind: input, shape index: {}]
  %s8 = inlined_call_operand.vmem [shape: f32[1,8], index: 8, kind: input, shape index: {}]
  %s9 = inlined_call_operand.hbm [shape: f32[2,8,8,8], index: 9, kind: output, shape index: {}]
  %s10 = sld [smem:[#allocation0]]
  $region46: #{tpu_custom_call.1} parent=0
    _
  %s12 = ssub.s32 1, %s10
  %s13 = scalar_select 0, %s12, %s10
  $region1: #{tpu_custom_call.1} parent=0
    #allocation4 [shape = 'u8[65536]{0}', space=vmem, size = 0x10000, scoped, tag = 'output window, operand 0, single buffered']
    #allocation5 [shape = 's32[1]{0}', space=sflag, size = 0x4, scoped, tag = 'scoped memory for tpu_custom_call.1']
    %14 = vsyncpa [#allocation5], 0
    // Predicated region
    $region2: #{tpu_custom_call.1} parent=1 // pred_check
      _
    $region3: #{tpu_custom_call.1} parent=1 // pred_check_branch
      %16 = sbr.rel (0) target = $region5
    $region4: #{tpu_custom_call.1} parent=1 // pred_region
      _
    $region5: #{tpu_custom_call.1} parent=1 // pred_fallthru
      _
    // Predicated region
    $region6: #{tpu_custom_call.1} parent=1 // pred_check
      _
    $region7: #{tpu_custom_call.1} parent=1 // pred_check_branch
      %18 = sbr.rel (0) target = $region9
    $region8: #{tpu_custom_call.1} parent=1 // pred_region
      _
    $region9: #{tpu_custom_call.1} parent=1 // pred_fallthru
      _
    // Predicated region
    $region10: #{tpu_custom_call.1} parent=1 // pred_check
      _
    $region11: #{tpu_custom_call.1} parent=1 // pred_check_branch
      %20 = sbr.rel (0) target = $region13
    $region12: #{tpu_custom_call.1} parent=1 // pred_region
      _
    $region13: #{tpu_custom_call.1} parent=1 // pred_fallthru
      _
    // Predicated region
    $region14: #{tpu_custom_call.1} parent=1 // pred_check
      _
    $region15: #{tpu_custom_call.1} parent=1 // pred_check_branch
      %22 = sbr.rel (0) target = $region17
    $region16: #{tpu_custom_call.1} parent=1 // pred_region
      _
    $region17: #{tpu_custom_call.1} parent=1 // pred_fallthru
      _
    // Predicated region
    $region18: #{tpu_custom_call.1} parent=1 // pred_check
      _
    $region19: #{tpu_custom_call.1} parent=1 // pred_check_branch
      %24 = sbr.rel (0) target = $region21
    $region20: #{tpu_custom_call.1} parent=1 // pred_region
      _
    $region21: #{tpu_custom_call.1} parent=1 // pred_fallthru
      _
    // Predicated region
    $region22: #{tpu_custom_call.1} parent=1 // pred_check
      _
    $region23: #{tpu_custom_call.1} parent=1 // pred_check_branch
      %26 = sbr.rel (0) target = $region25
    $region24: #{tpu_custom_call.1} parent=1 // pred_region
      _
    $region25: #{tpu_custom_call.1} parent=1 // pred_fallthru
      _
    // Predicated region
    $region26: #{tpu_custom_call.1} parent=1 // pred_check
      _
    $region27: #{tpu_custom_call.1} parent=1 // pred_check_branch
      %28 = sbr.rel (0) target = $region29
    $region28: #{tpu_custom_call.1} parent=1 // pred_region
      _
    $region29: #{tpu_custom_call.1} parent=1 // pred_fallthru
      _
    // Predicated region
    $region30: #{tpu_custom_call.1} parent=1 // pred_check
      _
    $region31: #{tpu_custom_call.1} parent=1 // pred_check_branch
      %30 = sbr.rel (0) target = $region33
    $region32: #{tpu_custom_call.1} parent=1 // pred_region
      _
    $region33: #{tpu_custom_call.1} parent=1 // pred_fallthru
      _
    // Predicated region
    $region34: #{tpu_custom_call.1} parent=1 // pred_check
      _
    $region35: #{tpu_custom_call.1} parent=1 // pred_check_branch
      %32 = sbr.rel (0) target = $region37
    $region36: #{tpu_custom_call.1} parent=1 // pred_region
      _
    $region37: #{tpu_custom_call.1} parent=1 // pred_fallthru
      _
    %v34 = vld [vmem:[%s0] sm:$0xff]
    %v35 = vld [vmem:[%s0 + $0x8] sm:$0xff]
    %v36 = vld [vmem:[%s0 + $0x10] sm:$0xff]
    %v37 = vld [vmem:[%s0 + $0x18] sm:$0xff]
    %v38 = vld [vmem:[%s0 + $0x20] sm:$0xff]
    %v39 = vld [vmem:[%s0 + $0x28] sm:$0xff]
    %v40 = vld [vmem:[%s0 + $0x30] sm:$0xff]
    %v41 = vld [vmem:[%s0 + $0x38] sm:$0xff]
    %v42 = vld [vmem:[%s0 + $0x40] sm:$0xff]
    %v43 = vld [vmem:[%s0 + $0x48] sm:$0xff]
    %v44 = vld [vmem:[%s0 + $0x50] sm:$0xff]
    %v45 = vld [vmem:[%s0 + $0x58] sm:$0xff]
    %v46 = vld [vmem:[%s0 + $0x60] sm:$0xff]
    %v47 = vld [vmem:[%s0 + $0x68] sm:$0xff]
    %v48 = vld [vmem:[%s0 + $0x70] sm:$0xff]
    %v49 = vld [vmem:[%s0 + $0x78] sm:$0xff]
    %v50 = vld [vmem:[%s0 + $0x80] sm:$0xff]
    %v51 = vld [vmem:[%s0 + $0x88] sm:$0xff]
    %v52 = vld [vmem:[%s0 + $0x90] sm:$0xff]
    %v53 = vld [vmem:[%s0 + $0x98] sm:$0xff]
    %v54 = vld [vmem:[%s0 + $0xa0] sm:$0xff]
    %v55 = vld [vmem:[%s0 + $0xa8] sm:$0xff]
    %v56 = vld [vmem:[%s0 + $0xb0] sm:$0xff]
    %v57 = vld [vmem:[%s0 + $0xb8] sm:$0xff]
    %v58 = vld [vmem:[%s0 + $0xc0] sm:$0xff]
    %v59 = vld [vmem:[%s0 + $0xc8] sm:$0xff]
    %v60 = vld [vmem:[%s0 + $0xd0] sm:$0xff]
    %v61 = vld [vmem:[%s0 + $0xd8] sm:$0xff]
    %v62 = vld [vmem:[%s0 + $0xe0] sm:$0xff]
    %v63 = vld [vmem:[%s0 + $0xe8] sm:$0xff]
    %v64 = vld [vmem:[%s0 + $0xf0] sm:$0xff]
    %v65 = vld [vmem:[%s0 + $0xf8] sm:$0xff]
    %v66 = vld [vmem:[%s0 + $0x100] sm:$0xff]
    %v67 = vld [vmem:[%s0 + $0x108] sm:$0xff]
    %v68 = vld [vmem:[%s0 + $0x110] sm:$0xff]
    %v69 = vld [vmem:[%s0 + $0x118] sm:$0xff]
    %v70 = vld [vmem:[%s0 + $0x120] sm:$0xff]
    %v71 = vld [vmem:[%s0 + $0x128] sm:$0xff]
    %v72 = vld [vmem:[%s0 + $0x130] sm:$0xff]
    %v73 = vld [vmem:[%s0 + $0x138] sm:$0xff]
    %v74 = vld [vmem:[%s0 + $0x140] sm:$0xff]
    %v75 = vld [vmem:[%s0 + $0x148] sm:$0xff]
    %v76 = vld [vmem:[%s0 + $0x150] sm:$0xff]
    %v77 = vld [vmem:[%s0 + $0x158] sm:$0xff]
    %v78 = vld [vmem:[%s0 + $0x160] sm:$0xff]
    %v79 = vld [vmem:[%s0 + $0x168] sm:$0xff]
    %v80 = vld [vmem:[%s0 + $0x170] sm:$0xff]
    %v81 = vld [vmem:[%s0 + $0x178] sm:$0xff]
    %v82 = vld [vmem:[%s0 + $0x180] sm:$0xff]
    %v83 = vld [vmem:[%s0 + $0x188] sm:$0xff]
    %v84 = vld [vmem:[%s0 + $0x190] sm:$0xff]
    %v85 = vld [vmem:[%s0 + $0x198] sm:$0xff]
    %v86 = vld [vmem:[%s0 + $0x1a0] sm:$0xff]
    %v87 = vld [vmem:[%s0 + $0x1a8] sm:$0xff]
    %v88 = vld [vmem:[%s0 + $0x1b0] sm:$0xff]
    %v89 = vld [vmem:[%s0 + $0x1b8] sm:$0xff]
    %v90 = vld [vmem:[%s0 + $0x1c0] sm:$0xff]
    %v91 = vld [vmem:[%s0 + $0x1c8] sm:$0xff]
    %v92 = vld [vmem:[%s0 + $0x1d0] sm:$0xff]
    %v93 = vld [vmem:[%s0 + $0x1d8] sm:$0xff]
    %v94 = vld [vmem:[%s0 + $0x1e0] sm:$0xff]
    %v95 = vld [vmem:[%s0 + $0x1e8] sm:$0xff]
    %v96 = vld [vmem:[%s0 + $0x1f0] sm:$0xff]
    %v97 = vld [vmem:[%s0 + $0x1f8] sm:$0xff]
    %v98 = vmax.f32 %v34, %v42
    %v99 = vmax.f32 %v35, %v43
    %v100 = vmax.f32 %v36, %v44
    %v101 = vmax.f32 %v37, %v45
    %v102 = vmax.f32 %v38, %v46
    %v103 = vmax.f32 %v39, %v47
    %v104 = vmax.f32 %v40, %v48
    %v105 = vmax.f32 %v41, %v49
    %v106 = vmax.f32 %v66, %v74
    %v107 = vmax.f32 %v67, %v75
    %v108 = vmax.f32 %v68, %v76
    %v109 = vmax.f32 %v69, %v77
    %v110 = vmax.f32 %v70, %v78
    %v111 = vmax.f32 %v71, %v79
    %v112 = vmax.f32 %v72, %v80
    %v113 = vmax.f32 %v73, %v81
    %v114 = vmax.f32 %v50, %v58
    %v115 = vmax.f32 %v51, %v59
    %v116 = vmax.f32 %v52, %v60
    %v117 = vmax.f32 %v53, %v61
    %v118 = vmax.f32 %v54, %v62
    %v119 = vmax.f32 %v55, %v63
    %v120 = vmax.f32 %v56, %v64
    %v121 = vmax.f32 %v57, %v65
    %v122 = vmax.f32 %v82, %v90
    %v123 = vmax.f32 %v83, %v91
    %v124 = vmax.f32 %v84, %v92
    %v125 = vmax.f32 %v85, %v93
    %v126 = vmax.f32 %v86, %v94
    %v127 = vmax.f32 %v87, %v95
    %v128 = vmax.f32 %v88, %v96
    %v129 = vmax.f32 %v89, %v97
    %v130 = vmax.f32 %v98, %v114
    %v131 = vmax.f32 %v99, %v115
    %v132 = vmax.f32 %v100, %v116
    %v133 = vmax.f32 %v101, %v117
    %v134 = vmax.f32 %v102, %v118
    %v135 = vmax.f32 %v103, %v119
    %v136 = vmax.f32 %v104, %v120
    %v137 = vmax.f32 %v105, %v121
    %v138 = vmax.f32 %v106, %v122
    %v139 = vmax.f32 %v107, %v123
    %v140 = vmax.f32 %v108, %v124
    %v141 = vmax.f32 %v109, %v125
    %v142 = vmax.f32 %v110, %v126
    %v143 = vmax.f32 %v111, %v127
    %v144 = vmax.f32 %v112, %v128
    %v145 = vmax.f32 %v113, %v129
    %vm146 = vcmask 31744
    %147 = vst.msk [vmem:[#allocation2] sm:$0xff] %vm146, 0.0
    %vm148 = vcmask 25600
    %149 = vst.msk [vmem:[#allocation2 + $0x8] sm:$0x3] %vm148, 0.0
    %150 = vst.msk [vmem:[#allocation2 + $0xa0] sm:$0xff] %vm146, 0.0
    %151 = vst.msk [vmem:[#allocation2 + $0xa8] sm:$0x3] %vm148, 0.0
    %s152 = scalar_lea.vmem [#allocation2], 144
    %153 = vst.msk [vmem:[%s152] sm:$0xff] %vm146, 0.0
    %154 = vst.msk [vmem:[%s152 + $0x8] sm:$0x3] %vm148, 0.0
    %155 = vst.msk [vmem:[%s152 + $0xa0] sm:$0xff] %vm146, 0.0
    %156 = vst.msk [vmem:[%s152 + $0xa8] sm:$0x3] %vm148, 0.0
    %vm157 = vcmask 24576
    %158 = vst.msk [vmem:[#allocation2] sm:$0x1] %vm157, 0.0
    %159 = vst.msk [vmem:[#allocation2 + $0x10] sm:$0x1] %vm157, 0.0
    %160 = vst.msk [vmem:[#allocation2 + $0x20] sm:$0x1] %vm157, 0.0
    %161 = vst.msk [vmem:[#allocation2 + $0x30] sm:$0x1] %vm157, 0.0
    %162 = vst.msk [vmem:[#allocation2 + $0x40] sm:$0x1] %vm157, 0.0
    %163 = vst.msk [vmem:[#allocation2 + $0x50] sm:$0x1] %vm157, 0.0
    %164 = vst.msk [vmem:[#allocation2 + $0x60] sm:$0x1] %vm157, 0.0
    %165 = vst.msk [vmem:[#allocation2 + $0x70] sm:$0x1] %vm157, 0.0
    %166 = vst.msk [vmem:[#allocation2 + $0x80] sm:$0x1] %vm157, 0.0
    %167 = vst.msk [vmem:[#allocation2 + $0x90] sm:$0x1] %vm157, 0.0
    %168 = vst.msk [vmem:[#allocation2 + $0xa0] sm:$0x1] %vm157, 0.0
    %169 = vst.msk [vmem:[#allocation2 + $0xb0] sm:$0x1] %vm157, 0.0
    %170 = vst.msk [vmem:[#allocation2 + $0xc0] sm:$0x1] %vm157, 0.0
    %171 = vst.msk [vmem:[#allocation2 + $0xd0] sm:$0x1] %vm157, 0.0
    %172 = vst.msk [vmem:[#allocation2 + $0xe0] sm:$0x1] %vm157, 0.0
    %173 = vst.msk [vmem:[#allocation2 + $0xf0] sm:$0x1] %vm157, 0.0
    %174 = vst.msk [vmem:[#allocation2 + $0x100] sm:$0x1] %vm157, 0.0
    %175 = vst.msk [vmem:[#allocation2 + $0x110] sm:$0x1] %vm157, 0.0
    %176 = vst.msk [vmem:[#allocation2 + $0x120] sm:$0x1] %vm157, 0.0
    %177 = vst.msk [vmem:[#allocation2 + $0x130] sm:$0x1] %vm157, 0.0
    %178 = vst.msk [vmem:[#allocation2 + $0x9] sm:$0x1] %vm157, 0.0
    %179 = vst.msk [vmem:[#allocation2 + $0x19] sm:$0x1] %vm157, 0.0
    %180 = vst.msk [vmem:[#allocation2 + $0x29] sm:$0x1] %vm157, 0.0
    %181 = vst.msk [vmem:[#allocation2 + $0x39] sm:$0x1] %vm157, 0.0
    %182 = vst.msk [vmem:[#allocation2 + $0x49] sm:$0x1] %vm157, 0.0
    %183 = vst.msk [vmem:[#allocation2 + $0x59] sm:$0x1] %vm157, 0.0
    %184 = vst.msk [vmem:[#allocation2 + $0x69] sm:$0x1] %vm157, 0.0
    %185 = vst.msk [vmem:[#allocation2 + $0x79] sm:$0x1] %vm157, 0.0
    %186 = vst.msk [vmem:[#allocation2 + $0x89] sm:$0x1] %vm157, 0.0
    %187 = vst.msk [vmem:[#allocation2 + $0x99] sm:$0x1] %vm157, 0.0
    %188 = vst.msk [vmem:[#allocation2 + $0xa9] sm:$0x1] %vm157, 0.0
    %189 = vst.msk [vmem:[#allocation2 + $0xb9] sm:$0x1] %vm157, 0.0
    %190 = vst.msk [vmem:[#allocation2 + $0xc9] sm:$0x1] %vm157, 0.0
    %191 = vst.msk [vmem:[#allocation2 + $0xd9] sm:$0x1] %vm157, 0.0
    %192 = vst.msk [vmem:[#allocation2 + $0xe9] sm:$0x1] %vm157, 0.0
    %193 = vst.msk [vmem:[#allocation2 + $0xf9] sm:$0x1] %vm157, 0.0
    %194 = vst.msk [vmem:[#allocation2 + $0x109] sm:$0x1] %vm157, 0.0
    %195 = vst.msk [vmem:[#allocation2 + $0x119] sm:$0x1] %vm157, 0.0
    %196 = vst.msk [vmem:[#allocation2 + $0x129] sm:$0x1] %vm157, 0.0
    %197 = vst.msk [vmem:[#allocation2 + $0x139] sm:$0x1] %vm157, 0.0
    %s198 = scalar_lea.vmem [#allocation2], 16
    %199 = vst.msk [vmem:[%s198 + $0x1] sm:$0xff] %vm146, %v130
    %200 = vst.msk [vmem:[%s198 + $0x11] sm:$0xff] %vm146, %v131
    %201 = vst.msk [vmem:[%s198 + $0x21] sm:$0xff] %vm146, %v132
    %202 = vst.msk [vmem:[%s198 + $0x31] sm:$0xff] %vm146, %v133
    %203 = vst.msk [vmem:[%s198 + $0x41] sm:$0xff] %vm146, %v134
    %204 = vst.msk [vmem:[%s198 + $0x51] sm:$0xff] %vm146, %v135
    %205 = vst.msk [vmem:[%s198 + $0x61] sm:$0xff] %vm146, %v136
    %206 = vst.msk [vmem:[%s198 + $0x71] sm:$0xff] %vm146, %v137
    %207 = vst.msk [vmem:[%s198 + $0xa1] sm:$0xff] %vm146, %v138
    %208 = vst.msk [vmem:[%s198 + $0xb1] sm:$0xff] %vm146, %v139
    %209 = vst.msk [vmem:[%s198 + $0xc1] sm:$0xff] %vm146, %v140
    %210 = vst.msk [vmem:[%s198 + $0xd1] sm:$0xff] %vm146, %v141
    %211 = vst.msk [vmem:[%s198 + $0xe1] sm:$0xff] %vm146, %v142
    %212 = vst.msk [vmem:[%s198 + $0xf1] sm:$0xff] %vm146, %v143
    %213 = vst.msk [vmem:[%s198 + $0x101] sm:$0xff] %vm146, %v144
    %214 = vst.msk [vmem:[%s198 + $0x111] sm:$0xff] %vm146, %v145
    %v215 = vld [vmem:[#allocation2] sm:$0xff]
    %v216 = vld [vmem:[#allocation2 + $0x10] sm:$0xff]
    %v217 = vld [vmem:[#allocation2 + $0x20] sm:$0xff]
    %v218 = vld [vmem:[#allocation2 + $0x30] sm:$0xff]
    %v219 = vld [vmem:[#allocation2 + $0x40] sm:$0xff]
    %v220 = vld [vmem:[#allocation2 + $0x50] sm:$0xff]
    %v221 = vld [vmem:[#allocation2 + $0x60] sm:$0xff]
    %v222 = vld [vmem:[#allocation2 + $0x70] sm:$0xff]
    %v223 = vld [vmem:[#allocation2 + $0xa0] sm:$0xff]
    %v224 = vld [vmem:[#allocation2 + $0xb0] sm:$0xff]
    %v225 = vld [vmem:[#allocation2 + $0xc0] sm:$0xff]
    %v226 = vld [vmem:[#allocation2 + $0xd0] sm:$0xff]
    %v227 = vld [vmem:[#allocation2 + $0xe0] sm:$0xff]
    %v228 = vld [vmem:[#allocation2 + $0xf0] sm:$0xff]
    %v229 = vld [vmem:[#allocation2 + $0x100] sm:$0xff]
    %v230 = vld [vmem:[#allocation2 + $0x110] sm:$0xff]
    %v231 = vld [vmem:[#allocation2 + $0x1] sm:$0xff]
    %v232 = vld [vmem:[#allocation2 + $0x11] sm:$0xff]
    %v233 = vld [vmem:[#allocation2 + $0x21] sm:$0xff]
    %v234 = vld [vmem:[#allocation2 + $0x31] sm:$0xff]
    %v235 = vld [vmem:[#allocation2 + $0x41] sm:$0xff]
    %v236 = vld [vmem:[#allocation2 + $0x51] sm:$0xff]
    %v237 = vld [vmem:[#allocation2 + $0x61] sm:$0xff]
    %v238 = vld [vmem:[#allocation2 + $0x71] sm:$0xff]
    %v239 = vld [vmem:[#allocation2 + $0xa1] sm:$0xff]
    %v240 = vld [vmem:[#allocation2 + $0xb1] sm:$0xff]
    %v241 = vld [vmem:[#allocation2 + $0xc1] sm:$0xff]
    %v242 = vld [vmem:[#allocation2 + $0xd1] sm:$0xff]
    %v243 = vld [vmem:[#allocation2 + $0xe1] sm:$0xff]
    %v244 = vld [vmem:[#allocation2 + $0xf1] sm:$0xff]
    %v245 = vld [vmem:[#allocation2 + $0x101] sm:$0xff]
    %v246 = vld [vmem:[#allocation2 + $0x111] sm:$0xff]
    %v247 = vld [vmem:[#allocation2 + $0x2] sm:$0xff]
    %v248 = vld [vmem:[#allocation2 + $0x12] sm:$0xff]
    %v249 = vld [vmem:[#allocation2 + $0x22] sm:$0xff]
    %v250 = vld [vmem:[#allocation2 + $0x32] sm:$0xff]
    %v251 = vld [vmem:[#allocation2 + $0x42] sm:$0xff]
    %v252 = vld [vmem:[#allocation2 + $0x52] sm:$0xff]
    %v253 = vld [vmem:[#allocation2 + $0x62] sm:$0xff]
    %v254 = vld [vmem:[#allocation2 + $0x72] sm:$0xff]
    %v255 = vld [vmem:[#allocation2 + $0xa2] sm:$0xff]
    %v256 = vld [vmem:[#allocation2 + $0xb2] sm:$0xff]
    %v257 = vld [vmem:[#allocation2 + $0xc2] sm:$0xff]
    %v258 = vld [vmem:[#allocation2 + $0xd2] sm:$0xff]
    %v259 = vld [vmem:[#allocation2 + $0xe2] sm:$0xff]
    %v260 = vld [vmem:[#allocation2 + $0xf2] sm:$0xff]
    %v261 = vld [vmem:[#allocation2 + $0x102] sm:$0xff]
    %v262 = vld [vmem:[#allocation2 + $0x112] sm:$0xff]
    %v263 = vld [vmem:[%s198] sm:$0xff]
    %v264 = vld [vmem:[%s198 + $0x10] sm:$0xff]
    %v265 = vld [vmem:[%s198 + $0x20] sm:$0xff]
    %v266 = vld [vmem:[%s198 + $0x30] sm:$0xff]
    %v267 = vld [vmem:[%s198 + $0x40] sm:$0xff]
    %v268 = vld [vmem:[%s198 + $0x50] sm:$0xff]
    %v269 = vld [vmem:[%s198 + $0x60] sm:$0xff]
    %v270 = vld [vmem:[%s198 + $0x70] sm:$0xff]
    %v271 = vld [vmem:[%s198 + $0xa0] sm:$0xff]
    %v272 = vld [vmem:[%s198 + $0xb0] sm:$0xff]
    %v273 = vld [vmem:[%s198 + $0xc0] sm:$0xff]
    %v274 = vld [vmem:[%s198 + $0xd0] sm:$0xff]
    %v275 = vld [vmem:[%s198 + $0xe0] sm:$0xff]
    %v276 = vld [vmem:[%s198 + $0xf0] sm:$0xff]
    %v277 = vld [vmem:[%s198 + $0x100] sm:$0xff]
    %v278 = vld [vmem:[%s198 + $0x110] sm:$0xff]
    %v279 = vld [vmem:[%s198 + $0x1] sm:$0xff]
    %v280 = vld [vmem:[%s198 + $0x11] sm:$0xff]
    %v281 = vld [vmem:[%s198 + $0x21] sm:$0xff]
    %v282 = vld [vmem:[%s198 + $0x31] sm:$0xff]
    %v283 = vld [vmem:[%s198 + $0x41] sm:$0xff]
    %v284 = vld [vmem:[%s198 + $0x51] sm:$0xff]
    %v285 = vld [vmem:[%s198 + $0x61] sm:$0xff]
    %v286 = vld [vmem:[%s198 + $0x71] sm:$0xff]
    %v287 = vld [vmem:[%s198 + $0xa1] sm:$0xff]
    %v288 = vld [vmem:[%s198 + $0xb1] sm:$0xff]
    %v289 = vld [vmem:[%s198 + $0xc1] sm:$0xff]
    %v290 = vld [vmem:[%s198 + $0xd1] sm:$0xff]
    %v291 = vld [vmem:[%s198 + $0xe1] sm:$0xff]
    %v292 = vld [vmem:[%s198 + $0xf1] sm:$0xff]
    %v293 = vld [vmem:[%s198 + $0x101] sm:$0xff]
    %v294 = vld [vmem:[%s198 + $0x111] sm:$0xff]
    %v295 = vld [vmem:[%s198 + $0x2] sm:$0xff]
    %v296 = vld [vmem:[%s198 + $0x12] sm:$0xff]
    %v297 = vld [vmem:[%s198 + $0x22] sm:$0xff]
    %v298 = vld [vmem:[%s198 + $0x32] sm:$0xff]
    %v299 = vld [vmem:[%s198 + $0x42] sm:$0xff]
    %v300 = vld [vmem:[%s198 + $0x52] sm:$0xff]
    %v301 = vld [vmem:[%s198 + $0x62] sm:$0xff]
    %v302 = vld [vmem:[%s198 + $0x72] sm:$0xff]
    %v303 = vld [vmem:[%s198 + $0xa2] sm:$0xff]
    %v304 = vld [vmem:[%s198 + $0xb2] sm:$0xff]
    %v305 = vld [vmem:[%s198 + $0xc2] sm:$0xff]
    %v306 = vld [vmem:[%s198 + $0xd2] sm:$0xff]
    %v307 = vld [vmem:[%s198 + $0xe2] sm:$0xff]
    %v308 = vld [vmem:[%s198 + $0xf2] sm:$0xff]
    %v309 = vld [vmem:[%s198 + $0x102] sm:$0xff]
    %v310 = vld [vmem:[%s198 + $0x112] sm:$0xff]
    %s311 = scalar_lea.vmem [#allocation2], 32
    %v312 = vld [vmem:[%s311] sm:$0xff]
    %v313 = vld [vmem:[%s311 + $0x10] sm:$0xff]
    %v314 = vld [vmem:[%s311 + $0x20] sm:$0xff]
    %v315 = vld [vmem:[%s311 + $0x30] sm:$0xff]
    %v316 = vld [vmem:[%s311 + $0x40] sm:$0xff]
    %v317 = vld [vmem:[%s311 + $0x50] sm:$0xff]
    %v318 = vld [vmem:[%s311 + $0x60] sm:$0xff]
    %v319 = vld [vmem:[%s311 + $0x70] sm:$0xff]
    %v320 = vld [vmem:[%s311 + $0xa0] sm:$0xff]
    %v321 = vld [vmem:[%s311 + $0xb0] sm:$0xff]
    %v322 = vld [vmem:[%s311 + $0xc0] sm:$0xff]
    %v323 = vld [vmem:[%s311 + $0xd0] sm:$0xff]
    %v324 = vld [vmem:[%s311 + $0xe0] sm:$0xff]
    %v325 = vld [vmem:[%s311 + $0xf0] sm:$0xff]
    %v326 = vld [vmem:[%s311 + $0x100] sm:$0xff]
    %v327 = vld [vmem:[%s311 + $0x110] sm:$0xff]
    %v328 = vld [vmem:[%s311 + $0x1] sm:$0xff]
    %v329 = vld [vmem:[%s311 + $0x11] sm:$0xff]
    %v330 = vld [vmem:[%s311 + $0x21] sm:$0xff]
    %v331 = vld [vmem:[%s311 + $0x31] sm:$0xff]
    %v332 = vld [vmem:[%s311 + $0x41] sm:$0xff]
    %v333 = vld [vmem:[%s311 + $0x51] sm:$0xff]
    %v334 = vld [vmem:[%s311 + $0x61] sm:$0xff]
    %v335 = vld [vmem:[%s311 + $0x71] sm:$0xff]
    %v336 = vld [vmem:[%s311 + $0xa1] sm:$0xff]
    %v337 = vld [vmem:[%s311 + $0xb1] sm:$0xff]
    %v338 = vld [vmem:[%s311 + $0xc1] sm:$0xff]
    %v339 = vld [vmem:[%s311 + $0xd1] sm:$0xff]
    %v340 = vld [vmem:[%s311 + $0xe1] sm:$0xff]
    %v341 = vld [vmem:[%s311 + $0xf1] sm:$0xff]
    %v342 = vld [vmem:[%s311 + $0x101] sm:$0xff]
    %v343 = vld [vmem:[%s311 + $0x111] sm:$0xff]
    %v344 = vld [vmem:[%s311 + $0x2] sm:$0xff]
    %v345 = vld [vmem:[%s311 + $0x12] sm:$0xff]
    %v346 = vld [vmem:[%s311 + $0x22] sm:$0xff]
    %v347 = vld [vmem:[%s311 + $0x32] sm:$0xff]
    %v348 = vld [vmem:[%s311 + $0x42] sm:$0xff]
    %v349 = vld [vmem:[%s311 + $0x52] sm:$0xff]
    %v350 = vld [vmem:[%s311 + $0x62] sm:$0xff]
    %v351 = vld [vmem:[%s311 + $0x72] sm:$0xff]
    %v352 = vld [vmem:[%s311 + $0xa2] sm:$0xff]
    %v353 = vld [vmem:[%s311 + $0xb2] sm:$0xff]
    %v354 = vld [vmem:[%s311 + $0xc2] sm:$0xff]
    %v355 = vld [vmem:[%s311 + $0xd2] sm:$0xff]
    %v356 = vld [vmem:[%s311 + $0xe2] sm:$0xff]
    %v357 = vld [vmem:[%s311 + $0xf2] sm:$0xff]
    %v358 = vld [vmem:[%s311 + $0x102] sm:$0xff]
    %v359 = vld [vmem:[%s311 + $0x112] sm:$0xff]
    %376 = vrot.lane.b32.xlu0 %v231, 4
    %v377 = vpop.permute.xlu0 %376
    %378 = vrot.lane.b32.xlu0 %v232, 4
    %v379 = vpop.permute.xlu0 %378
    %380 = vrot.lane.b32.xlu0 %v233, 4
    %v381 = vpop.permute.xlu0 %380
    %382 = vrot.lane.b32.xlu0 %v234, 4
    %v383 = vpop.permute.xlu0 %382
    %384 = vrot.lane.b32.xlu0 %v235, 4
    %v385 = vpop.permute.xlu0 %384
    %386 = vrot.lane.b32.xlu0 %v236, 4
    %v387 = vpop.permute.xlu0 %386
    %388 = vrot.lane.b32.xlu0 %v237, 4
    %v389 = vpop.permute.xlu0 %388
    %390 = vrot.lane.b32.xlu0 %v238, 4
    %v391 = vpop.permute.xlu0 %390
    %392 = vrot.lane.b32.xlu0 %v239, 4
    %v393 = vpop.permute.xlu0 %392
    %394 = vrot.lane.b32.xlu0 %v240, 4
    %v395 = vpop.permute.xlu0 %394
    %396 = vrot.lane.b32.xlu0 %v241, 4
    %v397 = vpop.permute.xlu0 %396
    %398 = vrot.lane.b32.xlu0 %v242, 4
    %v399 = vpop.permute.xlu0 %398
    %400 = vrot.lane.b32.xlu0 %v243, 4
    %v401 = vpop.permute.xlu0 %400
    %402 = vrot.lane.b32.xlu0 %v244, 4
    %v403 = vpop.permute.xlu0 %402
    %404 = vrot.lane.b32.xlu0 %v245, 4
    %v405 = vpop.permute.xlu0 %404
    %406 = vrot.lane.b32.xlu0 %v246, 4
    %v407 = vpop.permute.xlu0 %406
    %440 = vrot.lane.b32.xlu0 %v247, 8
    %v441 = vpop.permute.xlu0 %440
    %442 = vrot.lane.b32.xlu0 %v248, 8
    %v443 = vpop.permute.xlu0 %442
    %444 = vrot.lane.b32.xlu0 %v249, 8
    %v445 = vpop.permute.xlu0 %444
    %446 = vrot.lane.b32.xlu0 %v250, 8
    %v447 = vpop.permute.xlu0 %446
    %448 = vrot.lane.b32.xlu0 %v251, 8
    %v449 = vpop.permute.xlu0 %448
    %450 = vrot.lane.b32.xlu0 %v252, 8
    %v451 = vpop.permute.xlu0 %450
    %452 = vrot.lane.b32.xlu0 %v253, 8
    %v453 = vpop.permute.xlu0 %452
    %454 = vrot.lane.b32.xlu0 %v254, 8
    %v455 = vpop.permute.xlu0 %454
    %456 = vrot.lane.b32.xlu0 %v255, 8
    %v457 = vpop.permute.xlu0 %456
    %458 = vrot.lane.b32.xlu0 %v256, 8
    %v459 = vpop.permute.xlu0 %458
    %460 = vrot.lane.b32.xlu0 %v257, 8
    %v461 = vpop.permute.xlu0 %460
    %462 = vrot.lane.b32.xlu0 %v258, 8
    %v463 = vpop.permute.xlu0 %462
    %464 = vrot.lane.b32.xlu0 %v259, 8
    %v465 = vpop.permute.xlu0 %464
    %466 = vrot.lane.b32.xlu0 %v260, 8
    %v467 = vpop.permute.xlu0 %466
    %468 = vrot.lane.b32.xlu0 %v261, 8
    %v469 = vpop.permute.xlu0 %468
    %470 = vrot.lane.b32.xlu0 %v262, 8
    %v471 = vpop.permute.xlu0 %470
    %504 = vrot.lane.b32.xlu0 %v263, 12
    %v505 = vpop.permute.xlu0 %504
    %506 = vrot.lane.b32.xlu0 %v264, 12
    %v507 = vpop.permute.xlu0 %506
    %508 = vrot.lane.b32.xlu0 %v265, 12
    %v509 = vpop.permute.xlu0 %508
    %510 = vrot.lane.b32.xlu0 %v266, 12
    %v511 = vpop.permute.xlu0 %510
    %512 = vrot.lane.b32.xlu0 %v267, 12
    %v513 = vpop.permute.xlu0 %512
    %514 = vrot.lane.b32.xlu0 %v268, 12
    %v515 = vpop.permute.xlu0 %514
    %516 = vrot.lane.b32.xlu0 %v269, 12
    %v517 = vpop.permute.xlu0 %516
    %518 = vrot.lane.b32.xlu0 %v270, 12
    %v519 = vpop.permute.xlu0 %518
    %520 = vrot.lane.b32.xlu0 %v271, 12
    %v521 = vpop.permute.xlu0 %520
    %522 = vrot.lane.b32.xlu0 %v272, 12
    %v523 = vpop.permute.xlu0 %522
    %524 = vrot.lane.b32.xlu0 %v273, 12
    %v525 = vpop.permute.xlu0 %524
    %526 = vrot.lane.b32.xlu0 %v274, 12
    %v527 = vpop.permute.xlu0 %526
    %528 = vrot.lane.b32.xlu0 %v275, 12
    %v529 = vpop.permute.xlu0 %528
    %530 = vrot.lane.b32.xlu0 %v276, 12
    %v531 = vpop.permute.xlu0 %530
    %532 = vrot.lane.b32.xlu0 %v277, 12
    %v533 = vpop.permute.xlu0 %532
    %534 = vrot.lane.b32.xlu0 %v278, 12
    %v535 = vpop.permute.xlu0 %534
    %568 = vrot.lane.b32.xlu0 %v279, 16
    %v569 = vpop.permute.xlu0 %568
    %570 = vrot.lane.b32.xlu0 %v280, 16
    %v571 = vpop.permute.xlu0 %570
    %572 = vrot.lane.b32.xlu0 %v281, 16
    %v573 = vpop.permute.xlu0 %572
    %574 = vrot.lane.b32.xlu0 %v282, 16
    %v575 = vpop.permute.xlu0 %574
    %576 = vrot.lane.b32.xlu0 %v283, 16
    %v577 = vpop.permute.xlu0 %576
    %578 = vrot.lane.b32.xlu0 %v284, 16
    %v579 = vpop.permute.xlu0 %578
    %580 = vrot.lane.b32.xlu0 %v285, 16
    %v581 = vpop.permute.xlu0 %580
    %582 = vrot.lane.b32.xlu0 %v286, 16
    %v583 = vpop.permute.xlu0 %582
    %584 = vrot.lane.b32.xlu0 %v287, 16
    %v585 = vpop.permute.xlu0 %584
    %586 = vrot.lane.b32.xlu0 %v288, 16
    %v587 = vpop.permute.xlu0 %586
    %588 = vrot.lane.b32.xlu0 %v289, 16
    %v589 = vpop.permute.xlu0 %588
    %590 = vrot.lane.b32.xlu0 %v290, 16
    %v591 = vpop.permute.xlu0 %590
    %592 = vrot.lane.b32.xlu0 %v291, 16
    %v593 = vpop.permute.xlu0 %592
    %594 = vrot.lane.b32.xlu0 %v292, 16
    %v595 = vpop.permute.xlu0 %594
    %596 = vrot.lane.b32.xlu0 %v293, 16
    %v597 = vpop.permute.xlu0 %596
    %598 = vrot.lane.b32.xlu0 %v294, 16
    %v599 = vpop.permute.xlu0 %598
    %632 = vrot.lane.b32.xlu0 %v295, 20
    %v633 = vpop.permute.xlu0 %632
    %634 = vrot.lane.b32.xlu0 %v296, 20
    %v635 = vpop.permute.xlu0 %634
    %636 = vrot.lane.b32.xlu0 %v297, 20
    %v637 = vpop.permute.xlu0 %636
    %638 = vrot.lane.b32.xlu0 %v298, 20
    %v639 = vpop.permute.xlu0 %638
    %640 = vrot.lane.b32.xlu0 %v299, 20
    %v641 = vpop.permute.xlu0 %640
    %642 = vrot.lane.b32.xlu0 %v300, 20
    %v643 = vpop.permute.xlu0 %642
    %644 = vrot.lane.b32.xlu0 %v301, 20
    %v645 = vpop.permute.xlu0 %644
    %646 = vrot.lane.b32.xlu0 %v302, 20
    %v647 = vpop.permute.xlu0 %646
    %648 = vrot.lane.b32.xlu0 %v303, 20
    %v649 = vpop.permute.xlu0 %648
    %650 = vrot.lane.b32.xlu0 %v304, 20
    %v651 = vpop.permute.xlu0 %650
    %652 = vrot.lane.b32.xlu0 %v305, 20
    %v653 = vpop.permute.xlu0 %652
    %654 = vrot.lane.b32.xlu0 %v306, 20
    %v655 = vpop.permute.xlu0 %654
    %656 = vrot.lane.b32.xlu0 %v307, 20
    %v657 = vpop.permute.xlu0 %656
    %658 = vrot.lane.b32.xlu0 %v308, 20
    %v659 = vpop.permute.xlu0 %658
    %660 = vrot.lane.b32.xlu0 %v309, 20
    %v661 = vpop.permute.xlu0 %660
    %662 = vrot.lane.b32.xlu0 %v310, 20
    %v663 = vpop.permute.xlu0 %662
    %696 = vrot.lane.b32.xlu0 %v312, 24
    %v697 = vpop.permute.xlu0 %696
    %698 = vrot.lane.b32.xlu0 %v313, 24
    %v699 = vpop.permute.xlu0 %698
    %700 = vrot.lane.b32.xlu0 %v314, 24
    %v701 = vpop.permute.xlu0 %700
    %702 = vrot.lane.b32.xlu0 %v315, 24
    %v703 = vpop.permute.xlu0 %702
    %704 = vrot.lane.b32.xlu0 %v316, 24
    %v705 = vpop.permute.xlu0 %704
    %706 = vrot.lane.b32.xlu0 %v317, 24
    %v707 = vpop.permute.xlu0 %706
    %708 = vrot.lane.b32.xlu0 %v318, 24
    %v709 = vpop.permute.xlu0 %708
    %710 = vrot.lane.b32.xlu0 %v319, 24
    %v711 = vpop.permute.xlu0 %710
    %712 = vrot.lane.b32.xlu0 %v320, 24
    %v713 = vpop.permute.xlu0 %712
    %714 = vrot.lane.b32.xlu0 %v321, 24
    %v715 = vpop.permute.xlu0 %714
    %716 = vrot.lane.b32.xlu0 %v322, 24
    %v717 = vpop.permute.xlu0 %716
    %718 = vrot.lane.b32.xlu0 %v323, 24
    %v719 = vpop.permute.xlu0 %718
    %720 = vrot.lane.b32.xlu0 %v324, 24
    %v721 = vpop.permute.xlu0 %720
    %722 = vrot.lane.b32.xlu0 %v325, 24
    %v723 = vpop.permute.xlu0 %722
    %724 = vrot.lane.b32.xlu0 %v326, 24
    %v725 = vpop.permute.xlu0 %724
    %726 = vrot.lane.b32.xlu0 %v327, 24
    %v727 = vpop.permute.xlu0 %726
    %760 = vrot.lane.b32.xlu0 %v328, 28
    %v761 = vpop.permute.xlu0 %760
    %762 = vrot.lane.b32.xlu0 %v329, 28
    %v763 = vpop.permute.xlu0 %762
    %764 = vrot.lane.b32.xlu0 %v330, 28
    %v765 = vpop.permute.xlu0 %764
    %766 = vrot.lane.b32.xlu0 %v331, 28
    %v767 = vpop.permute.xlu0 %766
    %768 = vrot.lane.b32.xlu0 %v332, 28
    %v769 = vpop.permute.xlu0 %768
    %770 = vrot.lane.b32.xlu0 %v333, 28
    %v771 = vpop.permute.xlu0 %770
    %772 = vrot.lane.b32.xlu0 %v334, 28
    %v773 = vpop.permute.xlu0 %772
    %774 = vrot.lane.b32.xlu0 %v335, 28
    %v775 = vpop.permute.xlu0 %774
    %776 = vrot.lane.b32.xlu0 %v336, 28
    %v777 = vpop.permute.xlu0 %776
    %778 = vrot.lane.b32.xlu0 %v337, 28
    %v779 = vpop.permute.xlu0 %778
    %780 = vrot.lane.b32.xlu0 %v338, 28
    %v781 = vpop.permute.xlu0 %780
    %782 = vrot.lane.b32.xlu0 %v339, 28
    %v783 = vpop.permute.xlu0 %782
    %784 = vrot.lane.b32.xlu0 %v340, 28
    %v785 = vpop.permute.xlu0 %784
    %786 = vrot.lane.b32.xlu0 %v341, 28
    %v787 = vpop.permute.xlu0 %786
    %788 = vrot.lane.b32.xlu0 %v342, 28
    %v789 = vpop.permute.xlu0 %788
    %790 = vrot.lane.b32.xlu0 %v343, 28
    %v791 = vpop.permute.xlu0 %790
    %824 = vrot.lane.b32.xlu0 %v344, 32
    %v825 = vpop.permute.xlu0 %824
    %826 = vrot.lane.b32.xlu0 %v345, 32
    %v827 = vpop.permute.xlu0 %826
    %828 = vrot.lane.b32.xlu0 %v346, 32
    %v829 = vpop.permute.xlu0 %828
    %830 = vrot.lane.b32.xlu0 %v347, 32
    %v831 = vpop.permute.xlu0 %830
    %832 = vrot.lane.b32.xlu0 %v348, 32
    %v833 = vpop.permute.xlu0 %832
    %834 = vrot.lane.b32.xlu0 %v349, 32
    %v835 = vpop.permute.xlu0 %834
    %836 = vrot.lane.b32.xlu0 %v350, 32
    %v837 = vpop.permute.xlu0 %836
    %838 = vrot.lane.b32.xlu0 %v351, 32
    %v839 = vpop.permute.xlu0 %838
    %840 = vrot.lane.b32.xlu0 %v352, 32
    %v841 = vpop.permute.xlu0 %840
    %842 = vrot.lane.b32.xlu0 %v353, 32
    %v843 = vpop.permute.xlu0 %842
    %844 = vrot.lane.b32.xlu0 %v354, 32
    %v845 = vpop.permute.xlu0 %844
    %846 = vrot.lane.b32.xlu0 %v355, 32
    %v847 = vpop.permute.xlu0 %846
    %848 = vrot.lane.b32.xlu0 %v356, 32
    %v849 = vpop.permute.xlu0 %848
    %850 = vrot.lane.b32.xlu0 %v357, 32
    %v851 = vpop.permute.xlu0 %850
    %852 = vrot.lane.b32.xlu0 %v358, 32
    %v853 = vpop.permute.xlu0 %852
    %854 = vrot.lane.b32.xlu0 %v359, 32
    %v855 = vpop.permute.xlu0 %854
    %v872 = vsel %vm146, %v215, %v377
    %v873 = vsel %vm146, %v216, %v379
    %v874 = vsel %vm146, %v217, %v381
    %v875 = vsel %vm146, %v218, %v383
    %v876 = vsel %vm146, %v219, %v385
    %v877 = vsel %vm146, %v220, %v387
    %v878 = vsel %vm146, %v221, %v389
    %v879 = vsel %vm146, %v222, %v391
    %v880 = vsel %vm146, %v223, %v393
    %v881 = vsel %vm146, %v224, %v395
    %v882 = vsel %vm146, %v225, %v397
    %v883 = vsel %vm146, %v226, %v399
    %v884 = vsel %vm146, %v227, %v401
    %v885 = vsel %vm146, %v228, %v403
    %v886 = vsel %vm146, %v229, %v405
    %v887 = vsel %vm146, %v230, %v407
    %vm888 = vcmask 64512
    %v889 = vsel %vm888, %v872, %v441
    %v890 = vsel %vm888, %v873, %v443
    %v891 = vsel %vm888, %v874, %v445
    %v892 = vsel %vm888, %v875, %v447
    %v893 = vsel %vm888, %v876, %v449
    %v894 = vsel %vm888, %v877, %v451
    %v895 = vsel %vm888, %v878, %v453
    %v896 = vsel %vm888, %v879, %v455
    %v897 = vsel %vm888, %v880, %v457
    %v898 = vsel %vm888, %v881, %v459
    %v899 = vsel %vm888, %v882, %v461
    %v900 = vsel %vm888, %v883, %v463
    %v901 = vsel %vm888, %v884, %v465
    %v902 = vsel %vm888, %v885, %v467
    %v903 = vsel %vm888, %v886, %v469
    %v904 = vsel %vm888, %v887, %v471
    %vm905 = vcmask 97280
    %v906 = vsel %vm905, %v889, %v505
    %v907 = vsel %vm905, %v890, %v507
    %v908 = vsel %vm905, %v891, %v509
    %v909 = vsel %vm905, %v892, %v511
    %v910 = vsel %vm905, %v893, %v513
    %v911 = vsel %vm905, %v894, %v515
    %v912 = vsel %vm905, %v895, %v517
    %v913 = vsel %vm905, %v896, %v519
    %v914 = vsel %vm905, %v897, %v521
    %v915 = vsel %vm905, %v898, %v523
    %v916 = vsel %vm905, %v899, %v525
    %v917 = vsel %vm905, %v900, %v527
    %v918 = vsel %vm905, %v901, %v529
    %v919 = vsel %vm905, %v902, %v531
    %v920 = vsel %vm905, %v903, %v533
    %v921 = vsel %vm905, %v904, %v535
    %vm922 = vcmask 130048
    %v923 = vsel %vm922, %v906, %v569
    %v924 = vsel %vm922, %v907, %v571
    %v925 = vsel %vm922, %v908, %v573
    %v926 = vsel %vm922, %v909, %v575
    %v927 = vsel %vm922, %v910, %v577
    %v928 = vsel %vm922, %v911, %v579
    %v929 = vsel %vm922, %v912, %v581
    %v930 = vsel %vm922, %v913, %v583
    %v931 = vsel %vm922, %v914, %v585
    %v932 = vsel %vm922, %v915, %v587
    %v933 = vsel %vm922, %v916, %v589
    %v934 = vsel %vm922, %v917, %v591
    %v935 = vsel %vm922, %v918, %v593
    %v936 = vsel %vm922, %v919, %v595
    %v937 = vsel %vm922, %v920, %v597
    %v938 = vsel %vm922, %v921, %v599
    %vm939 = vcmask 162816
    %v940 = vsel %vm939, %v923, %v633
    %v941 = vsel %vm939, %v924, %v635
    %v942 = vsel %vm939, %v925, %v637
    %v943 = vsel %vm939, %v926, %v639
    %v944 = vsel %vm939, %v927, %v641
    %v945 = vsel %vm939, %v928, %v643
    %v946 = vsel %vm939, %v929, %v645
    %v947 = vsel %vm939, %v930, %v647
    %v948 = vsel %vm939, %v931, %v649
    %v949 = vsel %vm939, %v932, %v651
    %v950 = vsel %vm939, %v933, %v653
    %v951 = vsel %vm939, %v934, %v655
    %v952 = vsel %vm939, %v935, %v657
    %v953 = vsel %vm939, %v936, %v659
    %v954 = vsel %vm939, %v937, %v661
    %v955 = vsel %vm939, %v938, %v663
    %vm956 = vcmask 195584
    %v957 = vsel %vm956, %v940, %v697
    %v958 = vsel %vm956, %v941, %v699
    %v959 = vsel %vm956, %v942, %v701
    %v960 = vsel %vm956, %v943, %v703
    %v961 = vsel %vm956, %v944, %v705
    %v962 = vsel %vm956, %v945, %v707
    %v963 = vsel %vm956, %v946, %v709
    %v964 = vsel %vm956, %v947, %v711
    %v965 = vsel %vm956, %v948, %v713
    %v966 = vsel %vm956, %v949, %v715
    %v967 = vsel %vm956, %v950, %v717
    %v968 = vsel %vm956, %v951, %v719
    %v969 = vsel %vm956, %v952, %v721
    %v970 = vsel %vm956, %v953, %v723
    %v971 = vsel %vm956, %v954, %v725
    %v972 = vsel %vm956, %v955, %v727
    %vm973 = vcmask 228352
    %v974 = vsel %vm973, %v957, %v761
    %v975 = vsel %vm973, %v958, %v763
    %v976 = vsel %vm973, %v959, %v765
    %v977 = vsel %vm973, %v960, %v767
    %v978 = vsel %vm973, %v961, %v769
    %v979 = vsel %vm973, %v962, %v771
    %v980 = vsel %vm973, %v963, %v773
    %v981 = vsel %vm973, %v964, %v775
    %v982 = vsel %vm973, %v965, %v777
    %v983 = vsel %vm973, %v966, %v779
    %v984 = vsel %vm973, %v967, %v781
    %v985 = vsel %vm973, %v968, %v783
    %v986 = vsel %vm973, %v969, %v785
    %v987 = vsel %vm973, %v970, %v787
    %v988 = vsel %vm973, %v971, %v789
    %v989 = vsel %vm973, %v972, %v791
    %vm990 = vcmask 261120
    %v991 = vsel %vm990, %v974, %v825
    %v992 = vsel %vm990, %v975, %v827
    %v993 = vsel %vm990, %v976, %v829
    %v994 = vsel %vm990, %v977, %v831
    %v995 = vsel %vm990, %v978, %v833
    %v996 = vsel %vm990, %v979, %v835
    %v997 = vsel %vm990, %v980, %v837
    %v998 = vsel %vm990, %v981, %v839
    %v999 = vsel %vm990, %v982, %v841
    %v1000 = vsel %vm990, %v983, %v843
    %v1001 = vsel %vm990, %v984, %v845
    %v1002 = vsel %vm990, %v985, %v847
    %v1003 = vsel %vm990, %v986, %v849
    %v1004 = vsel %vm990, %v987, %v851
    %v1005 = vsel %vm990, %v988, %v853
    %v1006 = vsel %vm990, %v989, %v855
    %v1007 = vpack.c.bf16 %v992, %v991
    %v1008 = vpack.c.bf16 %v994, %v993
    %v1009 = vpack.c.bf16 %v996, %v995
    %v1010 = vpack.c.bf16 %v998, %v997
    %v1011 = vpack.c.bf16 %v1000, %v999
    %v1012 = vpack.c.bf16 %v1002, %v1001
    %v1013 = vpack.c.bf16 %v1004, %v1003
    %v1014 = vpack.c.bf16 %v1006, %v1005
    %v1015 = vld [vmem:[%s1] sm:$0xf]
    %v1016 = vld [vmem:[%s1 + $0x4] sm:$0xf]
    %v1017 = vld [vmem:[%s1 + $0x8] sm:$0xf]
    %v1018 = vld [vmem:[%s1 + $0xc] sm:$0xf]
    %v1019 = vld [vmem:[%s1 + $0x10] sm:$0x3]
    %v1025 = vunpack.c.l.b16 %v1015
    %v1026 = vunpack.c.l.b16 %v1016
    %v1027 = vunpack.c.l.b16 %v1017
    %v1028 = vunpack.c.l.b16 %v1018
    %v1029 = vunpack.c.l.b16 %v1019
    %v1030 = vpack.c.b16 %v1026, %v1025
    %v1031 = vpack.c.b16 %v1028, %v1027
    %v1032 = vpack.c.b16 %v1029, %v1029
    %vm1035 = vcmask 293888
    %v1037 = vsel %vm1035, %v1007, 0
    %v1040 = vsel %vm1035, %v1008, 0
    %v1043 = vsel %vm1035, %v1009, 0
    %v1046 = vsel %vm1035, %v1010, 0
    %v1049 = vsel %vm1035, %v1011, 0
    %v1052 = vsel %vm1035, %v1012, 0
    %v1055 = vsel %vm1035, %v1013, 0
    %v1058 = vsel %vm1035, %v1014, 0
    %vm1060 = vcmask 1041408
    %v1062 = vsel %vm1060, %v1032, 0
    %1064 = vmatpush.bf16.msra.mxu0 0
    %1065 = vmatpush.bf16.msra.mxu0 0
    %1066 = vmatpush.bf16.msra.mxu0 0
    %1067 = vmatpush.bf16.msra.mxu0 0
    %1068 = vmatpush.bf16.msra.mxu0 0
    %1069 = vmatpush.bf16.msra.mxu0 %v1062
    %1070 = vmatpush.bf16.msra.mxu0 %v1031
    %1071 = vmatpush.bf16.msra.mxu0 %v1030
    %1072 = vmatmul.bf16.gmra.mxu0 %v1037
    %v1073 = vpop.f32.mrf.mxu0
    %v1074 = vadd.f32 0.0, %v1073
    %v1075 = vpop.f32.mrf.mxu0
    %v1076 = vadd.f32 0.0, %v1075
    %1077 = vmatmul.bf16.gmra.mxu0 %v1040
    %v1078 = vpop.f32.mrf.mxu0
    %v1079 = vadd.f32 0.0, %v1078
    %v1080 = vpop.f32.mrf.mxu0
    %v1081 = vadd.f32 0.0, %v1080
    %1082 = vmatmul.bf16.gmra.mxu0 %v1043
    %v1083 = vpop.f32.mrf.mxu0
    %v1084 = vadd.f32 0.0, %v1083
    %v1085 = vpop.f32.mrf.mxu0
    %v1086 = vadd.f32 0.0, %v1085
    %1087 = vmatmul.bf16.gmra.mxu0 %v1046
    %v1088 = vpop.f32.mrf.mxu0
    %v1089 = vadd.f32 0.0, %v1088
    %v1090 = vpop.f32.mrf.mxu0
    %v1091 = vadd.f32 0.0, %v1090
    %1092 = vmatmul.bf16.gmra.mxu0 %v1049
    %v1093 = vpop.f32.mrf.mxu0
    %v1094 = vadd.f32 0.0, %v1093
    %v1095 = vpop.f32.mrf.mxu0
    %v1096 = vadd.f32 0.0, %v1095
    %1097 = vmatmul.bf16.gmra.mxu0 %v1052
    %v1098 = vpop.f32.mrf.mxu0
    %v1099 = vadd.f32 0.0, %v1098
    %v1100 = vpop.f32.mrf.mxu0
    %v1101 = vadd.f32 0.0, %v1100
    %1102 = vmatmul.bf16.gmra.mxu0 %v1055
    %v1103 = vpop.f32.mrf.mxu0
    %v1104 = vadd.f32 0.0, %v1103
    %v1105 = vpop.f32.mrf.mxu0
    %v1106 = vadd.f32 0.0, %v1105
    %1107 = vmatmul.bf16.gmra.mxu0 %v1058
    %v1108 = vpop.f32.mrf.mxu0
    %v1109 = vadd.f32 0.0, %v1108
    %v1110 = vpop.f32.mrf.mxu0
    %v1111 = vadd.f32 0.0, %v1110
    %1112 = vdwg.mxu0
    %v1113 = vld [vmem:[%s2] sm:$0x1]
    %v1115 = vperm.slane %v1113, 0
    %v1117 = vmul.f32 %v1074, %v1115
    %v1118 = vmul.f32 %v1076, %v1115
    %v1119 = vmul.f32 %v1079, %v1115
    %v1120 = vmul.f32 %v1081, %v1115
    %v1121 = vmul.f32 %v1084, %v1115
    %v1122 = vmul.f32 %v1086, %v1115
    %v1123 = vmul.f32 %v1089, %v1115
    %v1124 = vmul.f32 %v1091, %v1115
    %v1125 = vmul.f32 %v1094, %v1115
    %v1126 = vmul.f32 %v1096, %v1115
    %v1127 = vmul.f32 %v1099, %v1115
    %v1128 = vmul.f32 %v1101, %v1115
    %v1129 = vmul.f32 %v1104, %v1115
    %v1130 = vmul.f32 %v1106, %v1115
    %v1131 = vmul.f32 %v1109, %v1115
    %v1132 = vmul.f32 %v1111, %v1115
    %v1133 = vld [vmem:[%s3] sm:$0x1]
    %v1135 = vperm.slane %v1133, 0
    %v1137 = vadd.f32 %v1117, %v1135
    %v1138 = vadd.f32 %v1118, %v1135
    %v1139 = vadd.f32 %v1119, %v1135
    %v1140 = vadd.f32 %v1120, %v1135
    %v1141 = vadd.f32 %v1121, %v1135
    %v1142 = vadd.f32 %v1122, %v1135
    %v1143 = vadd.f32 %v1123, %v1135
    %v1144 = vadd.f32 %v1124, %v1135
    %v1145 = vadd.f32 %v1125, %v1135
    %v1146 = vadd.f32 %v1126, %v1135
    %v1147 = vadd.f32 %v1127, %v1135
    %v1148 = vadd.f32 %v1128, %v1135
    %v1149 = vadd.f32 %v1129, %v1135
    %v1150 = vadd.f32 %v1130, %v1135
    %v1151 = vadd.f32 %v1131, %v1135
    %v1152 = vadd.f32 %v1132, %v1135
    %v1153 = vmax.f32 %v1137, 0.0
    %v1154 = vmax.f32 %v1138, 0.0
    %v1155 = vmax.f32 %v1139, 0.0
    %v1156 = vmax.f32 %v1140, 0.0
    %v1157 = vmax.f32 %v1141, 0.0
    %v1158 = vmax.f32 %v1142, 0.0
    %v1159 = vmax.f32 %v1143, 0.0
    %v1160 = vmax.f32 %v1144, 0.0
    %v1161 = vmax.f32 %v1145, 0.0
    %v1162 = vmax.f32 %v1146, 0.0
    %v1163 = vmax.f32 %v1147, 0.0
    %v1164 = vmax.f32 %v1148, 0.0
    %v1165 = vmax.f32 %v1149, 0.0
    %v1166 = vmax.f32 %v1150, 0.0
    %v1167 = vmax.f32 %v1151, 0.0
    %v1168 = vmax.f32 %v1152, 0.0
    %1169 = vst.msk [vmem:[#allocation3] sm:$0xff] %vm888, 0.0
    %vm1170 = vcmask 58368
    %1171 = vst.msk [vmem:[#allocation3 + $0x8] sm:$0x3] %vm1170, 0.0
    %1172 = vst.msk [vmem:[#allocation3 + $0xa0] sm:$0xff] %vm888, 0.0
    %1173 = vst.msk [vmem:[#allocation3 + $0xa8] sm:$0x3] %vm1170, 0.0
    %s1174 = scalar_lea.vmem [#allocation3], 144
    %1175 = vst.msk [vmem:[%s1174] sm:$0xff] %vm888, 0.0
    %1176 = vst.msk [vmem:[%s1174 + $0x8] sm:$0x3] %vm1170, 0.0
    %1177 = vst.msk [vmem:[%s1174 + $0xa0] sm:$0xff] %vm888, 0.0
    %1178 = vst.msk [vmem:[%s1174 + $0xa8] sm:$0x3] %vm1170, 0.0
    %vm1179 = vcmask 57344
    %1180 = vst.msk [vmem:[#allocation3] sm:$0x1] %vm1179, 0.0
    %1181 = vst.msk [vmem:[#allocation3 + $0x10] sm:$0x1] %vm1179, 0.0
    %1182 = vst.msk [vmem:[#allocation3 + $0x20] sm:$0x1] %vm1179, 0.0
    %1183 = vst.msk [vmem:[#allocation3 + $0x30] sm:$0x1] %vm1179, 0.0
    %1184 = vst.msk [vmem:[#allocation3 + $0x40] sm:$0x1] %vm1179, 0.0
    %1185 = vst.msk [vmem:[#allocation3 + $0x50] sm:$0x1] %vm1179, 0.0
    %1186 = vst.msk [vmem:[#allocation3 + $0x60] sm:$0x1] %vm1179, 0.0
    %1187 = vst.msk [vmem:[#allocation3 + $0x70] sm:$0x1] %vm1179, 0.0
    %1188 = vst.msk [vmem:[#allocation3 + $0x80] sm:$0x1] %vm1179, 0.0
    %1189 = vst.msk [vmem:[#allocation3 + $0x90] sm:$0x1] %vm1179, 0.0
    %1190 = vst.msk [vmem:[#allocation3 + $0xa0] sm:$0x1] %vm1179, 0.0
    %1191 = vst.msk [vmem:[#allocation3 + $0xb0] sm:$0x1] %vm1179, 0.0
    %1192 = vst.msk [vmem:[#allocation3 + $0xc0] sm:$0x1] %vm1179, 0.0
    %1193 = vst.msk [vmem:[#allocation3 + $0xd0] sm:$0x1] %vm1179, 0.0
    %1194 = vst.msk [vmem:[#allocation3 + $0xe0] sm:$0x1] %vm1179, 0.0
    %1195 = vst.msk [vmem:[#allocation3 + $0xf0] sm:$0x1] %vm1179, 0.0
    %1196 = vst.msk [vmem:[#allocation3 + $0x100] sm:$0x1] %vm1179, 0.0
    %1197 = vst.msk [vmem:[#allocation3 + $0x110] sm:$0x1] %vm1179, 0.0
    %1198 = vst.msk [vmem:[#allocation3 + $0x120] sm:$0x1] %vm1179, 0.0
    %1199 = vst.msk [vmem:[#allocation3 + $0x130] sm:$0x1] %vm1179, 0.0
    %1200 = vst.msk [vmem:[#allocation3 + $0x9] sm:$0x1] %vm1179, 0.0
    %1201 = vst.msk [vmem:[#allocation3 + $0x19] sm:$0x1] %vm1179, 0.0
    %1202 = vst.msk [vmem:[#allocation3 + $0x29] sm:$0x1] %vm1179, 0.0
    %1203 = vst.msk [vmem:[#allocation3 + $0x39] sm:$0x1] %vm1179, 0.0
    %1204 = vst.msk [vmem:[#allocation3 + $0x49] sm:$0x1] %vm1179, 0.0
    %1205 = vst.msk [vmem:[#allocation3 + $0x59] sm:$0x1] %vm1179, 0.0
    %1206 = vst.msk [vmem:[#allocation3 + $0x69] sm:$0x1] %vm1179, 0.0
    %1207 = vst.msk [vmem:[#allocation3 + $0x79] sm:$0x1] %vm1179, 0.0
    %1208 = vst.msk [vmem:[#allocation3 + $0x89] sm:$0x1] %vm1179, 0.0
    %1209 = vst.msk [vmem:[#allocation3 + $0x99] sm:$0x1] %vm1179, 0.0
    %1210 = vst.msk [vmem:[#allocation3 + $0xa9] sm:$0x1] %vm1179, 0.0
    %1211 = vst.msk [vmem:[#allocation3 + $0xb9] sm:$0x1] %vm1179, 0.0
    %1212 = vst.msk [vmem:[#allocation3 + $0xc9] sm:$0x1] %vm1179, 0.0
    %1213 = vst.msk [vmem:[#allocation3 + $0xd9] sm:$0x1] %vm1179, 0.0
    %1214 = vst.msk [vmem:[#allocation3 + $0xe9] sm:$0x1] %vm1179, 0.0
    %1215 = vst.msk [vmem:[#allocation3 + $0xf9] sm:$0x1] %vm1179, 0.0
    %1216 = vst.msk [vmem:[#allocation3 + $0x109] sm:$0x1] %vm1179, 0.0
    %1217 = vst.msk [vmem:[#allocation3 + $0x119] sm:$0x1] %vm1179, 0.0
    %1218 = vst.msk [vmem:[#allocation3 + $0x129] sm:$0x1] %vm1179, 0.0
    %1219 = vst.msk [vmem:[#allocation3 + $0x139] sm:$0x1] %vm1179, 0.0
    %s1220 = scalar_lea.vmem [#allocation3], 16
    %1221 = vst.msk [vmem:[%s1220 + $0x1] sm:$0xff] %vm888, %v1153
    %1222 = vst.msk [vmem:[%s1220 + $0x11] sm:$0xff] %vm888, %v1154
    %1223 = vst.msk [vmem:[%s1220 + $0x21] sm:$0xff] %vm888, %v1155
    %1224 = vst.msk [vmem:[%s1220 + $0x31] sm:$0xff] %vm888, %v1156
    %1225 = vst.msk [vmem:[%s1220 + $0x41] sm:$0xff] %vm888, %v1157
    %1226 = vst.msk [vmem:[%s1220 + $0x51] sm:$0xff] %vm888, %v1158
    %1227 = vst.msk [vmem:[%s1220 + $0x61] sm:$0xff] %vm888, %v1159
    %1228 = vst.msk [vmem:[%s1220 + $0x71] sm:$0xff] %vm888, %v1160
    %1229 = vst.msk [vmem:[%s1220 + $0xa1] sm:$0xff] %vm888, %v1161
    %1230 = vst.msk [vmem:[%s1220 + $0xb1] sm:$0xff] %vm888, %v1162
    %1231 = vst.msk [vmem:[%s1220 + $0xc1] sm:$0xff] %vm888, %v1163
    %1232 = vst.msk [vmem:[%s1220 + $0xd1] sm:$0xff] %vm888, %v1164
    %1233 = vst.msk [vmem:[%s1220 + $0xe1] sm:$0xff] %vm888, %v1165
    %1234 = vst.msk [vmem:[%s1220 + $0xf1] sm:$0xff] %vm888, %v1166
    %1235 = vst.msk [vmem:[%s1220 + $0x101] sm:$0xff] %vm888, %v1167
    %1236 = vst.msk [vmem:[%s1220 + $0x111] sm:$0xff] %vm888, %v1168
    %v1237 = vld [vmem:[#allocation3] sm:$0xff]
    %v1238 = vld [vmem:[#allocation3 + $0x10] sm:$0xff]
    %v1239 = vld [vmem:[#allocation3 + $0x20] sm:$0xff]
    %v1240 = vld [vmem:[#allocation3 + $0x30] sm:$0xff]
    %v1241 = vld [vmem:[#allocation3 + $0x40] sm:$0xff]
    %v1242 = vld [vmem:[#allocation3 + $0x50] sm:$0xff]
    %v1243 = vld [vmem:[#allocation3 + $0x60] sm:$0xff]
    %v1244 = vld [vmem:[#allocation3 + $0x70] sm:$0xff]
    %v1245 = vld [vmem:[#allocation3 + $0xa0] sm:$0xff]
    %v1246 = vld [vmem:[#allocation3 + $0xb0] sm:$0xff]
    %v1247 = vld [vmem:[#allocation3 + $0xc0] sm:$0xff]
    %v1248 = vld [vmem:[#allocation3 + $0xd0] sm:$0xff]
    %v1249 = vld [vmem:[#allocation3 + $0xe0] sm:$0xff]
    %v1250 = vld [vmem:[#allocation3 + $0xf0] sm:$0xff]
    %v1251 = vld [vmem:[#allocation3 + $0x100] sm:$0xff]
    %v1252 = vld [vmem:[#allocation3 + $0x110] sm:$0xff]
    %v1253 = vld [vmem:[#allocation3 + $0x1] sm:$0xff]
    %v1254 = vld [vmem:[#allocation3 + $0x11] sm:$0xff]
    %v1255 = vld [vmem:[#allocation3 + $0x21] sm:$0xff]
    %v1256 = vld [vmem:[#allocation3 + $0x31] sm:$0xff]
    %v1257 = vld [vmem:[#allocation3 + $0x41] sm:$0xff]
    %v1258 = vld [vmem:[#allocation3 + $0x51] sm:$0xff]
    %v1259 = vld [vmem:[#allocation3 + $0x61] sm:$0xff]
    %v1260 = vld [vmem:[#allocation3 + $0x71] sm:$0xff]
    %v1261 = vld [vmem:[#allocation3 + $0xa1] sm:$0xff]
    %v1262 = vld [vmem:[#allocation3 + $0xb1] sm:$0xff]
    %v1263 = vld [vmem:[#allocation3 + $0xc1] sm:$0xff]
    %v1264 = vld [vmem:[#allocation3 + $0xd1] sm:$0xff]
    %v1265 = vld [vmem:[#allocation3 + $0xe1] sm:$0xff]
    %v1266 = vld [vmem:[#allocation3 + $0xf1] sm:$0xff]
    %v1267 = vld [vmem:[#allocation3 + $0x101] sm:$0xff]
    %v1268 = vld [vmem:[#allocation3 + $0x111] sm:$0xff]
    %v1269 = vld [vmem:[#allocation3 + $0x2] sm:$0xff]
    %v1270 = vld [vmem:[#allocation3 + $0x12] sm:$0xff]
    %v1271 = vld [vmem:[#allocation3 + $0x22] sm:$0xff]
    %v1272 = vld [vmem:[#allocation3 + $0x32] sm:$0xff]
    %v1273 = vld [vmem:[#allocation3 + $0x42] sm:$0xff]
    %v1274 = vld [vmem:[#allocation3 + $0x52] sm:$0xff]
    %v1275 = vld [vmem:[#allocation3 + $0x62] sm:$0xff]
    %v1276 = vld [vmem:[#allocation3 + $0x72] sm:$0xff]
    %v1277 = vld [vmem:[#allocation3 + $0xa2] sm:$0xff]
    %v1278 = vld [vmem:[#allocation3 + $0xb2] sm:$0xff]
    %v1279 = vld [vmem:[#allocation3 + $0xc2] sm:$0xff]
    %v1280 = vld [vmem:[#allocation3 + $0xd2] sm:$0xff]
    %v1281 = vld [vmem:[#allocation3 + $0xe2] sm:$0xff]
    %v1282 = vld [vmem:[#allocation3 + $0xf2] sm:$0xff]
    %v1283 = vld [vmem:[#allocation3 + $0x102] sm:$0xff]
    %v1284 = vld [vmem:[#allocation3 + $0x112] sm:$0xff]
    %v1285 = vld [vmem:[%s1220] sm:$0xff]
    %v1286 = vld [vmem:[%s1220 + $0x10] sm:$0xff]
    %v1287 = vld [vmem:[%s1220 + $0x20] sm:$0xff]
    %v1288 = vld [vmem:[%s1220 + $0x30] sm:$0xff]
    %v1289 = vld [vmem:[%s1220 + $0x40] sm:$0xff]
    %v1290 = vld [vmem:[%s1220 + $0x50] sm:$0xff]
    %v1291 = vld [vmem:[%s1220 + $0x60] sm:$0xff]
    %v1292 = vld [vmem:[%s1220 + $0x70] sm:$0xff]
    %v1293 = vld [vmem:[%s1220 + $0xa0] sm:$0xff]
    %v1294 = vld [vmem:[%s1220 + $0xb0] sm:$0xff]
    %v1295 = vld [vmem:[%s1220 + $0xc0] sm:$0xff]
    %v1296 = vld [vmem:[%s1220 + $0xd0] sm:$0xff]
    %v1297 = vld [vmem:[%s1220 + $0xe0] sm:$0xff]
    %v1298 = vld [vmem:[%s1220 + $0xf0] sm:$0xff]
    %v1299 = vld [vmem:[%s1220 + $0x100] sm:$0xff]
    %v1300 = vld [vmem:[%s1220 + $0x110] sm:$0xff]
    %v1301 = vld [vmem:[%s1220 + $0x1] sm:$0xff]
    %v1302 = vld [vmem:[%s1220 + $0x11] sm:$0xff]
    %v1303 = vld [vmem:[%s1220 + $0x21] sm:$0xff]
    %v1304 = vld [vmem:[%s1220 + $0x31] sm:$0xff]
    %v1305 = vld [vmem:[%s1220 + $0x41] sm:$0xff]
    %v1306 = vld [vmem:[%s1220 + $0x51] sm:$0xff]
    %v1307 = vld [vmem:[%s1220 + $0x61] sm:$0xff]
    %v1308 = vld [vmem:[%s1220 + $0x71] sm:$0xff]
    %v1309 = vld [vmem:[%s1220 + $0xa1] sm:$0xff]
    %v1310 = vld [vmem:[%s1220 + $0xb1] sm:$0xff]
    %v1311 = vld [vmem:[%s1220 + $0xc1] sm:$0xff]
    %v1312 = vld [vmem:[%s1220 + $0xd1] sm:$0xff]
    %v1313 = vld [vmem:[%s1220 + $0xe1] sm:$0xff]
    %v1314 = vld [vmem:[%s1220 + $0xf1] sm:$0xff]
    %v1315 = vld [vmem:[%s1220 + $0x101] sm:$0xff]
    %v1316 = vld [vmem:[%s1220 + $0x111] sm:$0xff]
    %v1317 = vld [vmem:[%s1220 + $0x2] sm:$0xff]
    %v1318 = vld [vmem:[%s1220 + $0x12] sm:$0xff]
    %v1319 = vld [vmem:[%s1220 + $0x22] sm:$0xff]
    %v1320 = vld [vmem:[%s1220 + $0x32] sm:$0xff]
    %v1321 = vld [vmem:[%s1220 + $0x42] sm:$0xff]
    %v1322 = vld [vmem:[%s1220 + $0x52] sm:$0xff]
    %v1323 = vld [vmem:[%s1220 + $0x62] sm:$0xff]
    %v1324 = vld [vmem:[%s1220 + $0x72] sm:$0xff]
    %v1325 = vld [vmem:[%s1220 + $0xa2] sm:$0xff]
    %v1326 = vld [vmem:[%s1220 + $0xb2] sm:$0xff]
    %v1327 = vld [vmem:[%s1220 + $0xc2] sm:$0xff]
    %v1328 = vld [vmem:[%s1220 + $0xd2] sm:$0xff]
    %v1329 = vld [vmem:[%s1220 + $0xe2] sm:$0xff]
    %v1330 = vld [vmem:[%s1220 + $0xf2] sm:$0xff]
    %v1331 = vld [vmem:[%s1220 + $0x102] sm:$0xff]
    %v1332 = vld [vmem:[%s1220 + $0x112] sm:$0xff]
    %s1333 = scalar_lea.vmem [#allocation3], 32
    %v1334 = vld [vmem:[%s1333] sm:$0xff]
    %v1335 = vld [vmem:[%s1333 + $0x10] sm:$0xff]
    %v1336 = vld [vmem:[%s1333 + $0x20] sm:$0xff]
    %v1337 = vld [vmem:[%s1333 + $0x30] sm:$0xff]
    %v1338 = vld [vmem:[%s1333 + $0x40] sm:$0xff]
    %v1339 = vld [vmem:[%s1333 + $0x50] sm:$0xff]
    %v1340 = vld [vmem:[%s1333 + $0x60] sm:$0xff]
    %v1341 = vld [vmem:[%s1333 + $0x70] sm:$0xff]
    %v1342 = vld [vmem:[%s1333 + $0xa0] sm:$0xff]
    %v1343 = vld [vmem:[%s1333 + $0xb0] sm:$0xff]
    %v1344 = vld [vmem:[%s1333 + $0xc0] sm:$0xff]
    %v1345 = vld [vmem:[%s1333 + $0xd0] sm:$0xff]
    %v1346 = vld [vmem:[%s1333 + $0xe0] sm:$0xff]
    %v1347 = vld [vmem:[%s1333 + $0xf0] sm:$0xff]
    %v1348 = vld [vmem:[%s1333 + $0x100] sm:$0xff]
    %v1349 = vld [vmem:[%s1333 + $0x110] sm:$0xff]
    %v1350 = vld [vmem:[%s1333 + $0x1] sm:$0xff]
    %v1351 = vld [vmem:[%s1333 + $0x11] sm:$0xff]
    %v1352 = vld [vmem:[%s1333 + $0x21] sm:$0xff]
    %v1353 = vld [vmem:[%s1333 + $0x31] sm:$0xff]
    %v1354 = vld [vmem:[%s1333 + $0x41] sm:$0xff]
    %v1355 = vld [vmem:[%s1333 + $0x51] sm:$0xff]
    %v1356 = vld [vmem:[%s1333 + $0x61] sm:$0xff]
    %v1357 = vld [vmem:[%s1333 + $0x71] sm:$0xff]
    %v1358 = vld [vmem:[%s1333 + $0xa1] sm:$0xff]
    %v1359 = vld [vmem:[%s1333 + $0xb1] sm:$0xff]
    %v1360 = vld [vmem:[%s1333 + $0xc1] sm:$0xff]
    %v1361 = vld [vmem:[%s1333 + $0xd1] sm:$0xff]
    %v1362 = vld [vmem:[%s1333 + $0xe1] sm:$0xff]
    %v1363 = vld [vmem:[%s1333 + $0xf1] sm:$0xff]
    %v1364 = vld [vmem:[%s1333 + $0x101] sm:$0xff]
    %v1365 = vld [vmem:[%s1333 + $0x111] sm:$0xff]
    %v1366 = vld [vmem:[%s1333 + $0x2] sm:$0xff]
    %v1367 = vld [vmem:[%s1333 + $0x12] sm:$0xff]
    %v1368 = vld [vmem:[%s1333 + $0x22] sm:$0xff]
    %v1369 = vld [vmem:[%s1333 + $0x32] sm:$0xff]
    %v1370 = vld [vmem:[%s1333 + $0x42] sm:$0xff]
    %v1371 = vld [vmem:[%s1333 + $0x52] sm:$0xff]
    %v1372 = vld [vmem:[%s1333 + $0x62] sm:$0xff]
    %v1373 = vld [vmem:[%s1333 + $0x72] sm:$0xff]
    %v1374 = vld [vmem:[%s1333 + $0xa2] sm:$0xff]
    %v1375 = vld [vmem:[%s1333 + $0xb2] sm:$0xff]
    %v1376 = vld [vmem:[%s1333 + $0xc2] sm:$0xff]
    %v1377 = vld [vmem:[%s1333 + $0xd2] sm:$0xff]
    %v1378 = vld [vmem:[%s1333 + $0xe2] sm:$0xff]
    %v1379 = vld [vmem:[%s1333 + $0xf2] sm:$0xff]
    %v1380 = vld [vmem:[%s1333 + $0x102] sm:$0xff]
    %v1381 = vld [vmem:[%s1333 + $0x112] sm:$0xff]
    %1398 = vrot.lane.b32.xlu0 %v1253, 8
    %v1399 = vpop.permute.xlu0 %1398
    %1400 = vrot.lane.b32.xlu0 %v1254, 8
    %v1401 = vpop.permute.xlu0 %1400
    %1402 = vrot.lane.b32.xlu0 %v1255, 8
    %v1403 = vpop.permute.xlu0 %1402
    %1404 = vrot.lane.b32.xlu0 %v1256, 8
    %v1405 = vpop.permute.xlu0 %1404
    %1406 = vrot.lane.b32.xlu0 %v1257, 8
    %v1407 = vpop.permute.xlu0 %1406
    %1408 = vrot.lane.b32.xlu0 %v1258, 8
    %v1409 = vpop.permute.xlu0 %1408
    %1410 = vrot.lane.b32.xlu0 %v1259, 8
    %v1411 = vpop.permute.xlu0 %1410
    %1412 = vrot.lane.b32.xlu0 %v1260, 8
    %v1413 = vpop.permute.xlu0 %1412
    %1414 = vrot.lane.b32.xlu0 %v1261, 8
    %v1415 = vpop.permute.xlu0 %1414
    %1416 = vrot.lane.b32.xlu0 %v1262, 8
    %v1417 = vpop.permute.xlu0 %1416
    %1418 = vrot.lane.b32.xlu0 %v1263, 8
    %v1419 = vpop.permute.xlu0 %1418
    %1420 = vrot.lane.b32.xlu0 %v1264, 8
    %v1421 = vpop.permute.xlu0 %1420
    %1422 = vrot.lane.b32.xlu0 %v1265, 8
    %v1423 = vpop.permute.xlu0 %1422
    %1424 = vrot.lane.b32.xlu0 %v1266, 8
    %v1425 = vpop.permute.xlu0 %1424
    %1426 = vrot.lane.b32.xlu0 %v1267, 8
    %v1427 = vpop.permute.xlu0 %1426
    %1428 = vrot.lane.b32.xlu0 %v1268, 8
    %v1429 = vpop.permute.xlu0 %1428
    %1462 = vrot.lane.b32.xlu0 %v1269, 16
    %v1463 = vpop.permute.xlu0 %1462
    %1464 = vrot.lane.b32.xlu0 %v1270, 16
    %v1465 = vpop.permute.xlu0 %1464
    %1466 = vrot.lane.b32.xlu0 %v1271, 16
    %v1467 = vpop.permute.xlu0 %1466
    %1468 = vrot.lane.b32.xlu0 %v1272, 16
    %v1469 = vpop.permute.xlu0 %1468
    %1470 = vrot.lane.b32.xlu0 %v1273, 16
    %v1471 = vpop.permute.xlu0 %1470
    %1472 = vrot.lane.b32.xlu0 %v1274, 16
    %v1473 = vpop.permute.xlu0 %1472
    %1474 = vrot.lane.b32.xlu0 %v1275, 16
    %v1475 = vpop.permute.xlu0 %1474
    %1476 = vrot.lane.b32.xlu0 %v1276, 16
    %v1477 = vpop.permute.xlu0 %1476
    %1478 = vrot.lane.b32.xlu0 %v1277, 16
    %v1479 = vpop.permute.xlu0 %1478
    %1480 = vrot.lane.b32.xlu0 %v1278, 16
    %v1481 = vpop.permute.xlu0 %1480
    %1482 = vrot.lane.b32.xlu0 %v1279, 16
    %v1483 = vpop.permute.xlu0 %1482
    %1484 = vrot.lane.b32.xlu0 %v1280, 16
    %v1485 = vpop.permute.xlu0 %1484
    %1486 = vrot.lane.b32.xlu0 %v1281, 16
    %v1487 = vpop.permute.xlu0 %1486
    %1488 = vrot.lane.b32.xlu0 %v1282, 16
    %v1489 = vpop.permute.xlu0 %1488
    %1490 = vrot.lane.b32.xlu0 %v1283, 16
    %v1491 = vpop.permute.xlu0 %1490
    %1492 = vrot.lane.b32.xlu0 %v1284, 16
    %v1493 = vpop.permute.xlu0 %1492
    %1526 = vrot.lane.b32.xlu0 %v1285, 24
    %v1527 = vpop.permute.xlu0 %1526
    %1528 = vrot.lane.b32.xlu0 %v1286, 24
    %v1529 = vpop.permute.xlu0 %1528
    %1530 = vrot.lane.b32.xlu0 %v1287, 24
    %v1531 = vpop.permute.xlu0 %1530
    %1532 = vrot.lane.b32.xlu0 %v1288, 24
    %v1533 = vpop.permute.xlu0 %1532
    %1534 = vrot.lane.b32.xlu0 %v1289, 24
    %v1535 = vpop.permute.xlu0 %1534
    %1536 = vrot.lane.b32.xlu0 %v1290, 24
    %v1537 = vpop.permute.xlu0 %1536
    %1538 = vrot.lane.b32.xlu0 %v1291, 24
    %v1539 = vpop.permute.xlu0 %1538
    %1540 = vrot.lane.b32.xlu0 %v1292, 24
    %v1541 = vpop.permute.xlu0 %1540
    %1542 = vrot.lane.b32.xlu0 %v1293, 24
    %v1543 = vpop.permute.xlu0 %1542
    %1544 = vrot.lane.b32.xlu0 %v1294, 24
    %v1545 = vpop.permute.xlu0 %1544
    %1546 = vrot.lane.b32.xlu0 %v1295, 24
    %v1547 = vpop.permute.xlu0 %1546
    %1548 = vrot.lane.b32.xlu0 %v1296, 24
    %v1549 = vpop.permute.xlu0 %1548
    %1550 = vrot.lane.b32.xlu0 %v1297, 24
    %v1551 = vpop.permute.xlu0 %1550
    %1552 = vrot.lane.b32.xlu0 %v1298, 24
    %v1553 = vpop.permute.xlu0 %1552
    %1554 = vrot.lane.b32.xlu0 %v1299, 24
    %v1555 = vpop.permute.xlu0 %1554
    %1556 = vrot.lane.b32.xlu0 %v1300, 24
    %v1557 = vpop.permute.xlu0 %1556
    %1590 = vrot.lane.b32.xlu0 %v1301, 32
    %v1591 = vpop.permute.xlu0 %1590
    %1592 = vrot.lane.b32.xlu0 %v1302, 32
    %v1593 = vpop.permute.xlu0 %1592
    %1594 = vrot.lane.b32.xlu0 %v1303, 32
    %v1595 = vpop.permute.xlu0 %1594
    %1596 = vrot.lane.b32.xlu0 %v1304, 32
    %v1597 = vpop.permute.xlu0 %1596
    %1598 = vrot.lane.b32.xlu0 %v1305, 32
    %v1599 = vpop.permute.xlu0 %1598
    %1600 = vrot.lane.b32.xlu0 %v1306, 32
    %v1601 = vpop.permute.xlu0 %1600
    %1602 = vrot.lane.b32.xlu0 %v1307, 32
    %v1603 = vpop.permute.xlu0 %1602
    %1604 = vrot.lane.b32.xlu0 %v1308, 32
    %v1605 = vpop.permute.xlu0 %1604
    %1606 = vrot.lane.b32.xlu0 %v1309, 32
    %v1607 = vpop.permute.xlu0 %1606
    %1608 = vrot.lane.b32.xlu0 %v1310, 32
    %v1609 = vpop.permute.xlu0 %1608
    %1610 = vrot.lane.b32.xlu0 %v1311, 32
    %v1611 = vpop.permute.xlu0 %1610
    %1612 = vrot.lane.b32.xlu0 %v1312, 32
    %v1613 = vpop.permute.xlu0 %1612
    %1614 = vrot.lane.b32.xlu0 %v1313, 32
    %v1615 = vpop.permute.xlu0 %1614
    %1616 = vrot.lane.b32.xlu0 %v1314, 32
    %v1617 = vpop.permute.xlu0 %1616
    %1618 = vrot.lane.b32.xlu0 %v1315, 32
    %v1619 = vpop.permute.xlu0 %1618
    %1620 = vrot.lane.b32.xlu0 %v1316, 32
    %v1621 = vpop.permute.xlu0 %1620
    %1654 = vrot.lane.b32.xlu0 %v1317, 40
    %v1655 = vpop.permute.xlu0 %1654
    %1656 = vrot.lane.b32.xlu0 %v1318, 40
    %v1657 = vpop.permute.xlu0 %1656
    %1658 = vrot.lane.b32.xlu0 %v1319, 40
    %v1659 = vpop.permute.xlu0 %1658
    %1660 = vrot.lane.b32.xlu0 %v1320, 40
    %v1661 = vpop.permute.xlu0 %1660
    %1662 = vrot.lane.b32.xlu0 %v1321, 40
    %v1663 = vpop.permute.xlu0 %1662
    %1664 = vrot.lane.b32.xlu0 %v1322, 40
    %v1665 = vpop.permute.xlu0 %1664
    %1666 = vrot.lane.b32.xlu0 %v1323, 40
    %v1667 = vpop.permute.xlu0 %1666
    %1668 = vrot.lane.b32.xlu0 %v1324, 40
    %v1669 = vpop.permute.xlu0 %1668
    %1670 = vrot.lane.b32.xlu0 %v1325, 40
    %v1671 = vpop.permute.xlu0 %1670
    %1672 = vrot.lane.b32.xlu0 %v1326, 40
    %v1673 = vpop.permute.xlu0 %1672
    %1674 = vrot.lane.b32.xlu0 %v1327, 40
    %v1675 = vpop.permute.xlu0 %1674
    %1676 = vrot.lane.b32.xlu0 %v1328, 40
    %v1677 = vpop.permute.xlu0 %1676
    %1678 = vrot.lane.b32.xlu0 %v1329, 40
    %v1679 = vpop.permute.xlu0 %1678
    %1680 = vrot.lane.b32.xlu0 %v1330, 40
    %v1681 = vpop.permute.xlu0 %1680
    %1682 = vrot.lane.b32.xlu0 %v1331, 40
    %v1683 = vpop.permute.xlu0 %1682
    %1684 = vrot.lane.b32.xlu0 %v1332, 40
    %v1685 = vpop.permute.xlu0 %1684
    %1718 = vrot.lane.b32.xlu0 %v1334, 48
    %v1719 = vpop.permute.xlu0 %1718
    %1720 = vrot.lane.b32.xlu0 %v1335, 48
    %v1721 = vpop.permute.xlu0 %1720
    %1722 = vrot.lane.b32.xlu0 %v1336, 48
    %v1723 = vpop.permute.xlu0 %1722
    %1724 = vrot.lane.b32.xlu0 %v1337, 48
    %v1725 = vpop.permute.xlu0 %1724
    %1726 = vrot.lane.b32.xlu0 %v1338, 48
    %v1727 = vpop.permute.xlu0 %1726
    %1728 = vrot.lane.b32.xlu0 %v1339, 48
    %v1729 = vpop.permute.xlu0 %1728
    %1730 = vrot.lane.b32.xlu0 %v1340, 48
    %v1731 = vpop.permute.xlu0 %1730
    %1732 = vrot.lane.b32.xlu0 %v1341, 48
    %v1733 = vpop.permute.xlu0 %1732
    %1734 = vrot.lane.b32.xlu0 %v1342, 48
    %v1735 = vpop.permute.xlu0 %1734
    %1736 = vrot.lane.b32.xlu0 %v1343, 48
    %v1737 = vpop.permute.xlu0 %1736
    %1738 = vrot.lane.b32.xlu0 %v1344, 48
    %v1739 = vpop.permute.xlu0 %1738
    %1740 = vrot.lane.b32.xlu0 %v1345, 48
    %v1741 = vpop.permute.xlu0 %1740
    %1742 = vrot.lane.b32.xlu0 %v1346, 48
    %v1743 = vpop.permute.xlu0 %1742
    %1744 = vrot.lane.b32.xlu0 %v1347, 48
    %v1745 = vpop.permute.xlu0 %1744
    %1746 = vrot.lane.b32.xlu0 %v1348, 48
    %v1747 = vpop.permute.xlu0 %1746
    %1748 = vrot.lane.b32.xlu0 %v1349, 48
    %v1749 = vpop.permute.xlu0 %1748
    %1782 = vrot.lane.b32.xlu0 %v1350, 56
    %v1783 = vpop.permute.xlu0 %1782
    %1784 = vrot.lane.b32.xlu0 %v1351, 56
    %v1785 = vpop.permute.xlu0 %1784
    %1786 = vrot.lane.b32.xlu0 %v1352, 56
    %v1787 = vpop.permute.xlu0 %1786
    %1788 = vrot.lane.b32.xlu0 %v1353, 56
    %v1789 = vpop.permute.xlu0 %1788
    %1790 = vrot.lane.b32.xlu0 %v1354, 56
    %v1791 = vpop.permute.xlu0 %1790
    %1792 = vrot.lane.b32.xlu0 %v1355, 56
    %v1793 = vpop.permute.xlu0 %1792
    %1794 = vrot.lane.b32.xlu0 %v1356, 56
    %v1795 = vpop.permute.xlu0 %1794
    %1796 = vrot.lane.b32.xlu0 %v1357, 56
    %v1797 = vpop.permute.xlu0 %1796
    %1798 = vrot.lane.b32.xlu0 %v1358, 56
    %v1799 = vpop.permute.xlu0 %1798
    %1800 = vrot.lane.b32.xlu0 %v1359, 56
    %v1801 = vpop.permute.xlu0 %1800
    %1802 = vrot.lane.b32.xlu0 %v1360, 56
    %v1803 = vpop.permute.xlu0 %1802
    %1804 = vrot.lane.b32.xlu0 %v1361, 56
    %v1805 = vpop.permute.xlu0 %1804
    %1806 = vrot.lane.b32.xlu0 %v1362, 56
    %v1807 = vpop.permute.xlu0 %1806
    %1808 = vrot.lane.b32.xlu0 %v1363, 56
    %v1809 = vpop.permute.xlu0 %1808
    %1810 = vrot.lane.b32.xlu0 %v1364, 56
    %v1811 = vpop.permute.xlu0 %1810
    %1812 = vrot.lane.b32.xlu0 %v1365, 56
    %v1813 = vpop.permute.xlu0 %1812
    %1846 = vrot.lane.b32.xlu0 %v1366, 64
    %v1847 = vpop.permute.xlu0 %1846
    %1848 = vrot.lane.b32.xlu0 %v1367, 64
    %v1849 = vpop.permute.xlu0 %1848
    %1850 = vrot.lane.b32.xlu0 %v1368, 64
    %v1851 = vpop.permute.xlu0 %1850
    %1852 = vrot.lane.b32.xlu0 %v1369, 64
    %v1853 = vpop.permute.xlu0 %1852
    %1854 = vrot.lane.b32.xlu0 %v1370, 64
    %v1855 = vpop.permute.xlu0 %1854
    %1856 = vrot.lane.b32.xlu0 %v1371, 64
    %v1857 = vpop.permute.xlu0 %1856
    %1858 = vrot.lane.b32.xlu0 %v1372, 64
    %v1859 = vpop.permute.xlu0 %1858
    %1860 = vrot.lane.b32.xlu0 %v1373, 64
    %v1861 = vpop.permute.xlu0 %1860
    %1862 = vrot.lane.b32.xlu0 %v1374, 64
    %v1863 = vpop.permute.xlu0 %1862
    %1864 = vrot.lane.b32.xlu0 %v1375, 64
    %v1865 = vpop.permute.xlu0 %1864
    %1866 = vrot.lane.b32.xlu0 %v1376, 64
    %v1867 = vpop.permute.xlu0 %1866
    %1868 = vrot.lane.b32.xlu0 %v1377, 64
    %v1869 = vpop.permute.xlu0 %1868
    %1870 = vrot.lane.b32.xlu0 %v1378, 64
    %v1871 = vpop.permute.xlu0 %1870
    %1872 = vrot.lane.b32.xlu0 %v1379, 64
    %v1873 = vpop.permute.xlu0 %1872
    %1874 = vrot.lane.b32.xlu0 %v1380, 64
    %v1875 = vpop.permute.xlu0 %1874
    %1876 = vrot.lane.b32.xlu0 %v1381, 64
    %v1877 = vpop.permute.xlu0 %1876
    %v1894 = vsel %vm888, %v1237, %v1399
    %v1895 = vsel %vm888, %v1238, %v1401
    %v1896 = vsel %vm888, %v1239, %v1403
    %v1897 = vsel %vm888, %v1240, %v1405
    %v1898 = vsel %vm888, %v1241, %v1407
    %v1899 = vsel %vm888, %v1242, %v1409
    %v1900 = vsel %vm888, %v1243, %v1411
    %v1901 = vsel %vm888, %v1244, %v1413
    %v1902 = vsel %vm888, %v1245, %v1415
    %v1903 = vsel %vm888, %v1246, %v1417
    %v1904 = vsel %vm888, %v1247, %v1419
    %v1905 = vsel %vm888, %v1248, %v1421
    %v1906 = vsel %vm888, %v1249, %v1423
    %v1907 = vsel %vm888, %v1250, %v1425
    %v1908 = vsel %vm888, %v1251, %v1427
    %v1909 = vsel %vm888, %v1252, %v1429
    %v1910 = vsel %vm922, %v1894, %v1463
    %v1911 = vsel %vm922, %v1895, %v1465
    %v1912 = vsel %vm922, %v1896, %v1467
    %v1913 = vsel %vm922, %v1897, %v1469
    %v1914 = vsel %vm922, %v1898, %v1471
    %v1915 = vsel %vm922, %v1899, %v1473
    %v1916 = vsel %vm922, %v1900, %v1475
    %v1917 = vsel %vm922, %v1901, %v1477
    %v1918 = vsel %vm922, %v1902, %v1479
    %v1919 = vsel %vm922, %v1903, %v1481
    %v1920 = vsel %vm922, %v1904, %v1483
    %v1921 = vsel %vm922, %v1905, %v1485
    %v1922 = vsel %vm922, %v1906, %v1487
    %v1923 = vsel %vm922, %v1907, %v1489
    %v1924 = vsel %vm922, %v1908, %v1491
    %v1925 = vsel %vm922, %v1909, %v1493
    %v1926 = vsel %vm956, %v1910, %v1527
    %v1927 = vsel %vm956, %v1911, %v1529
    %v1928 = vsel %vm956, %v1912, %v1531
    %v1929 = vsel %vm956, %v1913, %v1533
    %v1930 = vsel %vm956, %v1914, %v1535
    %v1931 = vsel %vm956, %v1915, %v1537
    %v1932 = vsel %vm956, %v1916, %v1539
    %v1933 = vsel %vm956, %v1917, %v1541
    %v1934 = vsel %vm956, %v1918, %v1543
    %v1935 = vsel %vm956, %v1919, %v1545
    %v1936 = vsel %vm956, %v1920, %v1547
    %v1937 = vsel %vm956, %v1921, %v1549
    %v1938 = vsel %vm956, %v1922, %v1551
    %v1939 = vsel %vm956, %v1923, %v1553
    %v1940 = vsel %vm956, %v1924, %v1555
    %v1941 = vsel %vm956, %v1925, %v1557
    %v1942 = vsel %vm990, %v1926, %v1591
    %v1943 = vsel %vm990, %v1927, %v1593
    %v1944 = vsel %vm990, %v1928, %v1595
    %v1945 = vsel %vm990, %v1929, %v1597
    %v1946 = vsel %vm990, %v1930, %v1599
    %v1947 = vsel %vm990, %v1931, %v1601
    %v1948 = vsel %vm990, %v1932, %v1603
    %v1949 = vsel %vm990, %v1933, %v1605
    %v1950 = vsel %vm990, %v1934, %v1607
    %v1951 = vsel %vm990, %v1935, %v1609
    %v1952 = vsel %vm990, %v1936, %v1611
    %v1953 = vsel %vm990, %v1937, %v1613
    %v1954 = vsel %vm990, %v1938, %v1615
    %v1955 = vsel %vm990, %v1939, %v1617
    %v1956 = vsel %vm990, %v1940, %v1619
    %v1957 = vsel %vm990, %v1941, %v1621
    %vm1958 = vcmask 326656
    %v1959 = vsel %vm1958, %v1942, %v1655
    %v1960 = vsel %vm1958, %v1943, %v1657
    %v1961 = vsel %vm1958, %v1944, %v1659
    %v1962 = vsel %vm1958, %v1945, %v1661
    %v1963 = vsel %vm1958, %v1946, %v1663
    %v1964 = vsel %vm1958, %v1947, %v1665
    %v1965 = vsel %vm1958, %v1948, %v1667
    %v1966 = vsel %vm1958, %v1949, %v1669
    %v1967 = vsel %vm1958, %v1950, %v1671
    %v1968 = vsel %vm1958, %v1951, %v1673
    %v1969 = vsel %vm1958, %v1952, %v1675
    %v1970 = vsel %vm1958, %v1953, %v1677
    %v1971 = vsel %vm1958, %v1954, %v1679
    %v1972 = vsel %vm1958, %v1955, %v1681
    %v1973 = vsel %vm1958, %v1956, %v1683
    %v1974 = vsel %vm1958, %v1957, %v1685
    %vm1975 = vcmask 392192
    %v1976 = vsel %vm1975, %v1959, %v1719
    %v1977 = vsel %vm1975, %v1960, %v1721
    %v1978 = vsel %vm1975, %v1961, %v1723
    %v1979 = vsel %vm1975, %v1962, %v1725
    %v1980 = vsel %vm1975, %v1963, %v1727
    %v1981 = vsel %vm1975, %v1964, %v1729
    %v1982 = vsel %vm1975, %v1965, %v1731
    %v1983 = vsel %vm1975, %v1966, %v1733
    %v1984 = vsel %vm1975, %v1967, %v1735
    %v1985 = vsel %vm1975, %v1968, %v1737
    %v1986 = vsel %vm1975, %v1969, %v1739
    %v1987 = vsel %vm1975, %v1970, %v1741
    %v1988 = vsel %vm1975, %v1971, %v1743
    %v1989 = vsel %vm1975, %v1972, %v1745
    %v1990 = vsel %vm1975, %v1973, %v1747
    %v1991 = vsel %vm1975, %v1974, %v1749
    %vm1992 = vcmask 457728
    %v1993 = vsel %vm1992, %v1976, %v1783
    %v1994 = vsel %vm1992, %v1977, %v1785
    %v1995 = vsel %vm1992, %v1978, %v1787
    %v1996 = vsel %vm1992, %v1979, %v1789
    %v1997 = vsel %vm1992, %v1980, %v1791
    %v1998 = vsel %vm1992, %v1981, %v1793
    %v1999 = vsel %vm1992, %v1982, %v1795
    %v2000 = vsel %vm1992, %v1983, %v1797
    %v2001 = vsel %vm1992, %v1984, %v1799
    %v2002 = vsel %vm1992, %v1985, %v1801
    %v2003 = vsel %vm1992, %v1986, %v1803
    %v2004 = vsel %vm1992, %v1987, %v1805
    %v2005 = vsel %vm1992, %v1988, %v1807
    %v2006 = vsel %vm1992, %v1989, %v1809
    %v2007 = vsel %vm1992, %v1990, %v1811
    %v2008 = vsel %vm1992, %v1991, %v1813
    %vm2009 = vcmask 523264
    %v2010 = vsel %vm2009, %v1993, %v1847
    %v2011 = vsel %vm2009, %v1994, %v1849
    %v2012 = vsel %vm2009, %v1995, %v1851
    %v2013 = vsel %vm2009, %v1996, %v1853
    %v2014 = vsel %vm2009, %v1997, %v1855
    %v2015 = vsel %vm2009, %v1998, %v1857
    %v2016 = vsel %vm2009, %v1999, %v1859
    %v2017 = vsel %vm2009, %v2000, %v1861
    %v2018 = vsel %vm2009, %v2001, %v1863
    %v2019 = vsel %vm2009, %v2002, %v1865
    %v2020 = vsel %vm2009, %v2003, %v1867
    %v2021 = vsel %vm2009, %v2004, %v1869
    %v2022 = vsel %vm2009, %v2005, %v1871
    %v2023 = vsel %vm2009, %v2006, %v1873
    %v2024 = vsel %vm2009, %v2007, %v1875
    %v2025 = vsel %vm2009, %v2008, %v1877
    %v2026 = vpack.c.bf16 %v2011, %v2010
    %v2027 = vpack.c.bf16 %v2013, %v2012
    %v2028 = vpack.c.bf16 %v2015, %v2014
    %v2029 = vpack.c.bf16 %v2017, %v2016
    %v2030 = vpack.c.bf16 %v2019, %v2018
    %v2031 = vpack.c.bf16 %v2021, %v2020
    %v2032 = vpack.c.bf16 %v2023, %v2022
    %v2033 = vpack.c.bf16 %v2025, %v2024
    %v2034 = vld [vmem:[%s4] sm:$0xf]
    %v2035 = vld [vmem:[%s4 + $0x4] sm:$0xf]
    %v2036 = vld [vmem:[%s4 + $0x8] sm:$0xf]
    %v2037 = vld [vmem:[%s4 + $0xc] sm:$0xf]
    %v2038 = vld [vmem:[%s4 + $0x10] sm:$0xf]
    %v2039 = vld [vmem:[%s4 + $0x14] sm:$0xf]
    %v2040 = vld [vmem:[%s4 + $0x18] sm:$0xf]
    %v2041 = vld [vmem:[%s4 + $0x1c] sm:$0xf]
    %v2042 = vld [vmem:[%s4 + $0x20] sm:$0xf]
    %v2052 = vunpack.c.l.b16 %v2034
    %v2053 = vunpack.c.l.b16 %v2035
    %v2054 = vunpack.c.l.b16 %v2036
    %v2055 = vunpack.c.l.b16 %v2037
    %v2056 = vunpack.c.l.b16 %v2038
    %v2057 = vunpack.c.l.b16 %v2039
    %v2058 = vunpack.c.l.b16 %v2040
    %v2059 = vunpack.c.l.b16 %v2041
    %v2060 = vunpack.c.l.b16 %v2042
    %v2061 = vpack.c.b16 %v2053, %v2052
    %v2062 = vpack.c.b16 %v2055, %v2054
    %v2063 = vpack.c.b16 %v2057, %v2056
    %v2064 = vpack.c.b16 %v2059, %v2058
    %v2065 = vpack.c.b16 %v2060, %v2060
    %vm2070 = vcmask 588800
    %v2072 = vsel %vm2070, %v2026, 0
    %v2075 = vsel %vm2070, %v2027, 0
    %v2078 = vsel %vm2070, %v2028, 0
    %v2081 = vsel %vm2070, %v2029, 0
    %v2084 = vsel %vm2070, %v2030, 0
    %v2087 = vsel %vm2070, %v2031, 0
    %v2090 = vsel %vm2070, %v2032, 0
    %v2093 = vsel %vm2070, %v2033, 0
    %vm2095 = vcmask 1043456
    %v2097 = vsel %vm2095, %v2065, 0
    %2099 = vmatpush.bf16.msra.mxu0 0
    %2100 = vmatpush.bf16.msra.mxu0 0
    %2101 = vmatpush.bf16.msra.mxu0 0
    %2102 = vmatpush.bf16.msra.mxu0 %v2097
    %2103 = vmatpush.bf16.msra.mxu0 %v2064
    %2104 = vmatpush.bf16.msra.mxu0 %v2063
    %2105 = vmatpush.bf16.msra.mxu0 %v2062
    %2106 = vmatpush.bf16.msra.mxu0 %v2061
    %2107 = vmatmul.bf16.gmra.mxu0 %v2072
    %v2108 = vpop.f32.mrf.mxu0
    %v2109 = vadd.f32 0.0, %v2108
    %v2110 = vpop.f32.mrf.mxu0
    %v2111 = vadd.f32 0.0, %v2110
    %2112 = vmatmul.bf16.gmra.mxu0 %v2075
    %v2113 = vpop.f32.mrf.mxu0
    %v2114 = vadd.f32 0.0, %v2113
    %v2115 = vpop.f32.mrf.mxu0
    %v2116 = vadd.f32 0.0, %v2115
    %2117 = vmatmul.bf16.gmra.mxu0 %v2078
    %v2118 = vpop.f32.mrf.mxu0
    %v2119 = vadd.f32 0.0, %v2118
    %v2120 = vpop.f32.mrf.mxu0
    %v2121 = vadd.f32 0.0, %v2120
    %2122 = vmatmul.bf16.gmra.mxu0 %v2081
    %v2123 = vpop.f32.mrf.mxu0
    %v2124 = vadd.f32 0.0, %v2123
    %v2125 = vpop.f32.mrf.mxu0
    %v2126 = vadd.f32 0.0, %v2125
    %2127 = vmatmul.bf16.gmra.mxu0 %v2084
    %v2128 = vpop.f32.mrf.mxu0
    %v2129 = vadd.f32 0.0, %v2128
    %v2130 = vpop.f32.mrf.mxu0
    %v2131 = vadd.f32 0.0, %v2130
    %2132 = vmatmul.bf16.gmra.mxu0 %v2087
    %v2133 = vpop.f32.mrf.mxu0
    %v2134 = vadd.f32 0.0, %v2133
    %v2135 = vpop.f32.mrf.mxu0
    %v2136 = vadd.f32 0.0, %v2135
    %2137 = vmatmul.bf16.gmra.mxu0 %v2090
    %v2138 = vpop.f32.mrf.mxu0
    %v2139 = vadd.f32 0.0, %v2138
    %v2140 = vpop.f32.mrf.mxu0
    %v2141 = vadd.f32 0.0, %v2140
    %2142 = vmatmul.bf16.gmra.mxu0 %v2093
    %v2143 = vpop.f32.mrf.mxu0
    %v2144 = vadd.f32 0.0, %v2143
    %v2145 = vpop.f32.mrf.mxu0
    %v2146 = vadd.f32 0.0, %v2145
    %2147 = vdwg.mxu0
    %v2148 = vld [vmem:[%s5] sm:$0x1]
    %v2150 = vperm.slane %v2148, 0
    %v2152 = vmul.f32 %v2109, %v2150
    %v2153 = vmul.f32 %v2111, %v2150
    %v2154 = vmul.f32 %v2114, %v2150
    %v2155 = vmul.f32 %v2116, %v2150
    %v2156 = vmul.f32 %v2119, %v2150
    %v2157 = vmul.f32 %v2121, %v2150
    %v2158 = vmul.f32 %v2124, %v2150
    %v2159 = vmul.f32 %v2126, %v2150
    %v2160 = vmul.f32 %v2129, %v2150
    %v2161 = vmul.f32 %v2131, %v2150
    %v2162 = vmul.f32 %v2134, %v2150
    %v2163 = vmul.f32 %v2136, %v2150
    %v2164 = vmul.f32 %v2139, %v2150
    %v2165 = vmul.f32 %v2141, %v2150
    %v2166 = vmul.f32 %v2144, %v2150
    %v2167 = vmul.f32 %v2146, %v2150
    %v2168 = vld [vmem:[%s6] sm:$0x1]
    %v2170 = vperm.slane %v2168, 0
    %v2172 = vadd.f32 %v2152, %v2170
    %v2173 = vadd.f32 %v2153, %v2170
    %v2174 = vadd.f32 %v2154, %v2170
    %v2175 = vadd.f32 %v2155, %v2170
    %v2176 = vadd.f32 %v2156, %v2170
    %v2177 = vadd.f32 %v2157, %v2170
    %v2178 = vadd.f32 %v2158, %v2170
    %v2179 = vadd.f32 %v2159, %v2170
    %v2180 = vadd.f32 %v2160, %v2170
    %v2181 = vadd.f32 %v2161, %v2170
    %v2182 = vadd.f32 %v2162, %v2170
    %v2183 = vadd.f32 %v2163, %v2170
    %v2184 = vadd.f32 %v2164, %v2170
    %v2185 = vadd.f32 %v2165, %v2170
    %v2186 = vadd.f32 %v2166, %v2170
    %v2187 = vadd.f32 %v2167, %v2170
    %v2188 = vmax.f32 %v2172, 0.0
    %v2189 = vmax.f32 %v2173, 0.0
    %v2190 = vmax.f32 %v2174, 0.0
    %v2191 = vmax.f32 %v2175, 0.0
    %v2192 = vmax.f32 %v2176, 0.0
    %v2193 = vmax.f32 %v2177, 0.0
    %v2194 = vmax.f32 %v2178, 0.0
    %v2195 = vmax.f32 %v2179, 0.0
    %v2196 = vmax.f32 %v2180, 0.0
    %v2197 = vmax.f32 %v2181, 0.0
    %v2198 = vmax.f32 %v2182, 0.0
    %v2199 = vmax.f32 %v2183, 0.0
    %v2200 = vmax.f32 %v2184, 0.0
    %v2201 = vmax.f32 %v2185, 0.0
    %v2202 = vmax.f32 %v2186, 0.0
    %v2203 = vmax.f32 %v2187, 0.0
    %v2204 = vpack.c.bf16 %v280, %v279
    %v2205 = vpack.c.bf16 %v282, %v281
    %v2206 = vpack.c.bf16 %v284, %v283
    %v2207 = vpack.c.bf16 %v286, %v285
    %v2208 = vpack.c.bf16 %v288, %v287
    %v2209 = vpack.c.bf16 %v290, %v289
    %v2210 = vpack.c.bf16 %v292, %v291
    %v2211 = vpack.c.bf16 %v294, %v293
    %v2212 = vld [vmem:[%s7] sm:$0x3]
    %v2213 = vld [vmem:[%s8] sm:$0x1]
    %v2215 = vperm.slane %v2213, 0
    %v2218 = vsel %vm146, %v2204, 0
    %v2221 = vsel %vm146, %v2205, 0
    %v2224 = vsel %vm146, %v2206, 0
    %v2227 = vsel %vm146, %v2207, 0
    %v2230 = vsel %vm146, %v2208, 0
    %v2233 = vsel %vm146, %v2209, 0
    %v2236 = vsel %vm146, %v2210, 0
    %v2239 = vsel %vm146, %v2211, 0
    %v2242 = vsel %vm1060, %v2212, 0
    %2244 = vmatpush.bf16.msra.mxu0 0
    %2245 = vmatpush.bf16.msra.mxu0 0
    %2246 = vmatpush.bf16.msra.mxu0 0
    %2247 = vmatpush.bf16.msra.mxu0 0
    %2248 = vmatpush.bf16.msra.mxu0 0
    %2249 = vmatpush.bf16.msra.mxu0 0
    %2250 = vmatpush.bf16.msra.mxu0 0
    %2251 = vmatpush.bf16.msra.mxu0 %v2242
    %2252 = vmatmul.bf16.gmra.mxu0 %v2218
    %v2253 = vpop.f32.mrf.mxu0
    %v2254 = vadd.f32 %v2215, %v2253
    %v2255 = vpop.f32.mrf.mxu0
    %v2256 = vadd.f32 %v2215, %v2255
    %2257 = vmatmul.bf16.gmra.mxu0 %v2221
    %v2258 = vpop.f32.mrf.mxu0
    %v2259 = vadd.f32 %v2215, %v2258
    %v2260 = vpop.f32.mrf.mxu0
    %v2261 = vadd.f32 %v2215, %v2260
    %2262 = vmatmul.bf16.gmra.mxu0 %v2224
    %v2263 = vpop.f32.mrf.mxu0
    %v2264 = vadd.f32 %v2215, %v2263
    %v2265 = vpop.f32.mrf.mxu0
    %v2266 = vadd.f32 %v2215, %v2265
    %2267 = vmatmul.bf16.gmra.mxu0 %v2227
    %v2268 = vpop.f32.mrf.mxu0
    %v2269 = vadd.f32 %v2215, %v2268
    %v2270 = vpop.f32.mrf.mxu0
    %v2271 = vadd.f32 %v2215, %v2270
    %2272 = vmatmul.bf16.gmra.mxu0 %v2230
    %v2273 = vpop.f32.mrf.mxu0
    %v2274 = vadd.f32 %v2215, %v2273
    %v2275 = vpop.f32.mrf.mxu0
    %v2276 = vadd.f32 %v2215, %v2275
    %2277 = vmatmul.bf16.gmra.mxu0 %v2233
    %v2278 = vpop.f32.mrf.mxu0
    %v2279 = vadd.f32 %v2215, %v2278
    %v2280 = vpop.f32.mrf.mxu0
    %v2281 = vadd.f32 %v2215, %v2280
    %2282 = vmatmul.bf16.gmra.mxu0 %v2236
    %v2283 = vpop.f32.mrf.mxu0
    %v2284 = vadd.f32 %v2215, %v2283
    %v2285 = vpop.f32.mrf.mxu0
    %v2286 = vadd.f32 %v2215, %v2285
    %2287 = vmatmul.bf16.gmra.mxu0 %v2239
    %v2288 = vpop.f32.mrf.mxu0
    %v2289 = vadd.f32 %v2215, %v2288
    %v2290 = vpop.f32.mrf.mxu0
    %v2291 = vadd.f32 %v2215, %v2290
    %2292 = vdwg.mxu0
    %v2293 = vadd.f32 %v2254, %v2188
    %v2294 = vadd.f32 %v2256, %v2189
    %v2295 = vadd.f32 %v2259, %v2190
    %v2296 = vadd.f32 %v2261, %v2191
    %v2297 = vadd.f32 %v2264, %v2192
    %v2298 = vadd.f32 %v2266, %v2193
    %v2299 = vadd.f32 %v2269, %v2194
    %v2300 = vadd.f32 %v2271, %v2195
    %v2301 = vadd.f32 %v2274, %v2196
    %v2302 = vadd.f32 %v2276, %v2197
    %v2303 = vadd.f32 %v2279, %v2198
    %v2304 = vadd.f32 %v2281, %v2199
    %v2305 = vadd.f32 %v2284, %v2200
    %v2306 = vadd.f32 %v2286, %v2201
    %v2307 = vadd.f32 %v2289, %v2202
    %v2308 = vadd.f32 %v2291, %v2203
    %v2309 = vmax.f32 %v2293, 0.0
    %v2310 = vmax.f32 %v2294, 0.0
    %v2311 = vmax.f32 %v2295, 0.0
    %v2312 = vmax.f32 %v2296, 0.0
    %v2313 = vmax.f32 %v2297, 0.0
    %v2314 = vmax.f32 %v2298, 0.0
    %v2315 = vmax.f32 %v2299, 0.0
    %v2316 = vmax.f32 %v2300, 0.0
    %v2317 = vmax.f32 %v2301, 0.0
    %v2318 = vmax.f32 %v2302, 0.0
    %v2319 = vmax.f32 %v2303, 0.0
    %v2320 = vmax.f32 %v2304, 0.0
    %v2321 = vmax.f32 %v2305, 0.0
    %v2322 = vmax.f32 %v2306, 0.0
    %v2323 = vmax.f32 %v2307, 0.0
    %v2324 = vmax.f32 %v2308, 0.0
    %2325 = vst.msk [vmem:[#allocation4] sm:$0xff] %vm888, %v2309
    %2326 = vst.msk [vmem:[#allocation4 + $0x8] sm:$0xff] %vm888, %v2310
    %2327 = vst.msk [vmem:[#allocation4 + $0x10] sm:$0xff] %vm888, %v2311
    %2328 = vst.msk [vmem:[#allocation4 + $0x18] sm:$0xff] %vm888, %v2312
    %2329 = vst.msk [vmem:[#allocation4 + $0x20] sm:$0xff] %vm888, %v2313
    %2330 = vst.msk [vmem:[#allocation4 + $0x28] sm:$0xff] %vm888, %v2314
    %2331 = vst.msk [vmem:[#allocation4 + $0x30] sm:$0xff] %vm888, %v2315
    %2332 = vst.msk [vmem:[#allocation4 + $0x38] sm:$0xff] %vm888, %v2316
    %2333 = vst.msk [vmem:[#allocation4 + $0x40] sm:$0xff] %vm888, %v2317
    %2334 = vst.msk [vmem:[#allocation4 + $0x48] sm:$0xff] %vm888, %v2318
    %2335 = vst.msk [vmem:[#allocation4 + $0x50] sm:$0xff] %vm888, %v2319
    %2336 = vst.msk [vmem:[#allocation4 + $0x58] sm:$0xff] %vm888, %v2320
    %2337 = vst.msk [vmem:[#allocation4 + $0x60] sm:$0xff] %vm888, %v2321
    %2338 = vst.msk [vmem:[#allocation4 + $0x68] sm:$0xff] %vm888, %v2322
    %2339 = vst.msk [vmem:[#allocation4 + $0x70] sm:$0xff] %vm888, %v2323
    %2340 = vst.msk [vmem:[#allocation4 + $0x78] sm:$0xff] %vm888, %v2324
    // Predicated region
    $region38: #{tpu_custom_call.1} parent=1 // pred_check
      _
    $region39: #{tpu_custom_call.1} parent=1 // pred_check_branch
      %2342 = sbr.rel (0) target = $region41
    $region40: #{tpu_custom_call.1} parent=1 // pred_region
      %2344 = vsyncadd [#allocation5], 0
      %s2345 = sshll.u32 [#allocation4], 4
      %s2346 = int_to_ptr.vmem [resolvable:$true] %s2345
      %s2347 = sshll.u32 %s9, 4
      %s2348 = int_to_ptr.hbm [resolvable:$true] %s2347
      %2353 = dma.vmem_to_hbm [thread:$0]  %s2346, 2048, %s2348, [#allocation5], 128, 128, 8
    $region41: #{tpu_custom_call.1} parent=1 // pred_fallthru
      _
    // Predicated region
    $region42: #{tpu_custom_call.1} parent=1 // pred_check
      _
    $region43: #{tpu_custom_call.1} parent=1 // pred_check_branch
      %2355 = sbr.rel (0) target = $region45
    $region44: #{tpu_custom_call.1} parent=1 // pred_region
      %2357 = dma.done [#allocation5], 2048
    $region45: #{tpu_custom_call.1} parent=1 // pred_fallthru
      _
    %2358 = vsyncpa [#allocation5], 1

</llo_original>
